<compile_context>
chip_gen: v7x
topology: tpu7x:2x2x1
jax: 0.10.0
libtpu: 0.0.40
codegen_flags: <defaults>
</compile_context>

<pallas_src>
import jax
import jax.numpy as jnp
import numpy as np
from jax import lax
from jax.experimental import pallas as pl
from jax.experimental.pallas import tpu as pltpu


# --------------------------------------------------------------------------- config
def make_config(num_input, channel, F1, D, fs, num_class, signal_length):
    """Mirrors the shape arithmetic in EEGNet.__init__ exactly (Python round())."""
    F2 = D * F1
    K1 = int(round(fs / 2))                       # kernel_size_1 = (1, K1)
    K3 = int(round(fs / 8))                       # kernel_size_3 = (1, K3)
    pad1 = int(round((K1 - 1) / 2)) - 1           # kernel_padding_1 = (0, pad1)
    pad3 = int(round((K3 - 1) / 2))               # kernel_padding_3 = (0, pad3)
    W = signal_length
    W1 = W + 2 * pad1 - K1 + 1                    # after temporal conv
    W2 = W1 // 4                                  # after AvgPool2d((1, 4))
    W3 = W2 + 2 * pad3 - K3 + 1                   # after separable depthwise conv
    W4 = W3 // 8                                  # after AvgPool2d((1, 8))
    Fdense = F2 * W4
    assert Fdense == F2 * int(round(signal_length / 32)), "invalid (fs, signal_length) combo"
    return dict(num_input=num_input, channel=channel, F1=F1, D=D, F2=F2,
                num_class=num_class, W=W, K1=K1, K3=K3, pad1=pad1, pad3=pad3,
                W1=W1, W2=W2, W3=W3, W4=W4, Fdense=Fdense)


# --------------------------------------------------------------------------- kernel
def make_kernel():
    f32, bf16 = jnp.float32, jnp.bfloat16

    def elu(v):
        # Clamp the exponent input so the discarded branch never produces inf.
        return jnp.where(v > 0.0, v, jnp.exp(jnp.minimum(v, 0.0)) - 1.0)

    def kernel(x_ref, w12_ref, b12_ref, m345_ref, b3_ref, wd2_ref, bd_ref, out_ref):
        # stage 1+2: temporal conv (pad1 folded) + BN1 + depthwise-over-channels
        # conv + BN2 + ELU.  bf16 operands, f32 accumulation.
        z = jnp.dot(x_ref[...], w12_ref[...], preferred_element_type=f32) + b12_ref[...]
        z = elu(z)                                           # (BN, K2), f32, lane-dense
        # stages 3-5 fused: AvgPool(1,4) + pad3 + depthwise temporal conv +
        # pointwise 1x1 conv + BN3 — all pre-folded into one matrix (M345).
        r = jnp.dot(z.astype(bf16), m345_ref[...], preferred_element_type=f32) + b3_ref[...]
        r = elu(r)                                           # (BN, F2*W3)
        # stages 6-8: AvgPool(1,8) + Flatten + Dense (folded into wd2) + Softmax.
        logits = jnp.dot(r.astype(bf16), wd2_ref[...], preferred_element_type=f32) + bd_ref[...]
        m = jnp.max(logits, axis=-1, keepdims=True)
        e = jnp.exp(logits - m)
        out_ref[...] = e * pl.reciprocal(jnp.sum(e, axis=-1, keepdims=True), approx=True)

    return kernel


# --------------------------------------------------------------------------- wrapper
def eegnet_forward(x, params, cfg):
    f32, bf16 = jnp.float32, jnp.bfloat16
    eps = 1e-5
    N = x.shape[0]
    Cin, H, F1, D, F2 = cfg['num_input'], cfg['channel'], cfg['F1'], cfg['D'], cfg['F2']
    K1, K3, pad1, pad3 = cfg['K1'], cfg['K3'], cfg['pad1'], cfg['pad3']
    W, W1, W2, W3, W4 = cfg['W'], cfg['W1'], cfg['W2'], cfg['W3'], cfg['W4']
    nc = cfg['num_class']
    W2p = W2 + 2 * pad3
    CHW = Cin * H * W                              # contraction axis, pad1 folded into band
    K2 = pl.cdiv(F2 * W1, 128) * 128               # lane-tile aligned F2*W1 (504 -> 512)
    K3dim = F2 * W3

    p = {k: jnp.asarray(v, f32) for k, v in params.items()}

    # ---------- parameter algebra only (no data compute) --------------------------
    s1 = p['g1'] / jnp.sqrt(p['v1'] + eps)
    t1 = (p['b1'] - p['m1']) * s1 + p['be1']
    s2 = p['g2'] / jnp.sqrt(p['v2'] + eps)
    t2 = (p['b2'] - p['m2']) * s2 + p['be2']
    s3 = p['g3'] / jnp.sqrt(p['v3'] + eps)

    g = jnp.arange(F2) // D                        # torch groups=F1 mapping
    w1r = p['w1'].reshape(F1, Cin, K1)
    w2r = p['w2'].reshape(F2, H)
    w3r = p['w3'].reshape(F2, K3)
    w4r = p['w4'].reshape(F2, F2)

    # Banded Toeplitz for conv1 with pad1 folded in (tap index = s - t + pad1),
    # built against the UN-padded time axis so no input padding is needed.
    d1 = jnp.arange(W)[:, None] - jnp.arange(W1)[None, :] + pad1
    band1 = jnp.where((d1 >= 0) & (d1 < K1), w1r[:, :, jnp.clip(d1, 0, K1 - 1)], 0.0)
    coef = s2 * s1[g]                              # BN1*BN2 scales per output channel
    W12 = jnp.einsum('o,oh,ocst->chsot', coef, w2r, band1[g]).reshape(CHW, F2 * W1)
    beta12 = s2 * t1[g] * jnp.sum(w2r, axis=1) + t2
    b12row = jnp.repeat(beta12, W1)[None, :]
    W12 = jnp.pad(W12, ((0, 0), (0, K2 - F2 * W1)))           # lane-tile align cols
    b12row = jnp.pad(b12row, ((0, 0), (0, K2 - F2 * W1)))     # padded cols -> elu(0)=0

    # AvgPool(1,4) (+truncation) + pad3 zero-pad + per-channel depthwise conv3 +
    # pointwise 1x1 conv + BN3 scale — all folded into ONE matrix (M34 @ W4kr).
    P1 = ((jnp.arange(W1)[:, None] // 4) == jnp.arange(W2)[None, :]).astype(f32) / 4.0
    P1p = jnp.pad(P1, ((0, 0), (pad3, pad3)))
    d3 = jnp.arange(W2p)[:, None] - jnp.arange(W3)[None, :]
    band3 = jnp.where((d3 >= 0) & (d3 < K3), w3r[:, jnp.clip(d3, 0, K3 - 1)], 0.0)
    Bo = jnp.einsum('uv,cvt->cut', P1p, band3)                 # (F2, W1, W3)
    M345 = jnp.einsum('cut,oc,o->cuot', Bo, w4r, s3).reshape(F2 * W1, K3dim)
    M345 = jnp.pad(M345, ((0, K2 - F2 * W1), (0, 0)))
    beta3 = s3 * (w4r @ p['b3'] + p['b4'] - p['m3']) + p['be3']
    b3row = jnp.repeat(beta3, W3)[None, :]

    # AvgPool(1,8) + channel-major Flatten folded into the Dense layer.
    P2 = ((jnp.arange(W3)[:, None] // 8) == jnp.arange(W4)[None, :]).astype(f32) / 8.0
    wdr = p['wd'].reshape(nc, F2, W4)
    Wd2 = jnp.einsum('uv,cov->ouc', P2, wdr).reshape(K3dim, nc)
    bdrow = p['bd'][None, :]

    # ---------- input layout plumbing ---------------------------------------------
    x2 = x.reshape(N, CHW)

    BN = min(256, pl.cdiv(N, 8) * 8)               # fills MXU M dim on v6e/v7x
    if N > 8 and pl.cdiv(N, BN) < 2:               # >= 2 grid steps -> v7x 2-TC sharding
        BN = pl.cdiv(pl.cdiv(N, 2), 8) * 8
    Np = pl.cdiv(N, BN) * BN
    if Np != N:
        x2 = jnp.pad(x2, ((0, Np - N), (0, 0)))

    # bf16 MXU operands; biases and all elementwise math stay f32.
    x2 = x2.astype(bf16)
    W12, M345, Wd2 = W12.astype(bf16), M345.astype(bf16), Wd2.astype(bf16)

    rep = lambda i: (0, 0)                         # constant index map: weights stay resident

    def call(single_buffer_weights):
        if single_buffer_weights:
            wspec = lambda shape: pl.BlockSpec(shape, rep, pipeline_mode=pl.Buffered(1))
        else:
            wspec = lambda shape: pl.BlockSpec(shape, rep)
        return pl.pallas_call(
            make_kernel(),
            out_shape=jax.ShapeDtypeStruct((Np, nc), f32),
            grid_spec=pltpu.PrefetchScalarGridSpec(
                num_scalar_prefetch=0,
                grid=(Np // BN,),
                in_specs=[
                    pl.BlockSpec((BN, CHW), lambda i: (i, 0)),   # only operand that streams
                    wspec((CHW, K2)),
                    wspec((1, K2)),
                    wspec((K2, K3dim)),
                    wspec((1, K3dim)),
                    wspec((K3dim, nc)),
                    wspec((1, nc)),
                ],
                out_specs=pl.BlockSpec((BN, nc), lambda i: (i, 0)),
            ),
            compiler_params=pltpu.CompilerParams(
                dimension_semantics=("parallel",),               # batch grid, megacore-shardable
                vmem_limit_bytes=32 * 1024 * 1024),              # explicit (v5e scoped default = 16 MiB)
        )(x2, W12, b12row, M345, b3row, Wd2, bdrow)

    try:
        out = jax.block_until_ready(call(single_buffer_weights=True))
    except Exception:
        # Fallback for jax versions where pl.Buffered(1) on a pallas_call BlockSpec
        # is not supported: default (double-buffered) weight specs.
        out = jax.block_until_ready(call(single_buffer_weights=False))
    return out[:N]


# --------------------------------------------------------------------------- params
def init_params(key, cfg):
    ks = jax.random.split(key, 22)
    Cin, H = cfg['num_input'], cfg['channel']
    F1, F2 = cfg['F1'], cfg['F2']
    K1, K3 = cfg['K1'], cfg['K3']
    nc, Fd = cfg['num_class'], cfg['Fdense']

    def nrm(k, shape, s=0.1):
        return s * jax.random.normal(k, shape, jnp.float32)

    return dict(
        # conv2d (temporal) + BN1
        w1=nrm(ks[0], (F1, Cin, 1, K1)), b1=nrm(ks[1], (F1,)),
        g1=1.0 + nrm(ks[2], (F1,)), be1=nrm(ks[3], (F1,)),
        m1=nrm(ks[4], (F1,)), v1=1.0 + 0.3 * jax.random.uniform(ks[5], (F1,)),
        # Depthwise_conv2D + BN2
        w2=nrm(ks[6], (F2, 1, H, 1)), b2=nrm(ks[7], (F2,)),
        g2=1.0 + nrm(ks[8], (F2,)), be2=nrm(ks[9], (F2,)),
        m2=nrm(ks[10], (F2,)), v2=1.0 + 0.3 * jax.random.uniform(ks[11], (F2,)),
        # Separable_conv2D depth + point + BN3
        w3=nrm(ks[12], (F2, 1, 1, K3)), b3=nrm(ks[13], (F2,)),
        w4=nrm(ks[14], (F2, F2, 1, 1)), b4=nrm(ks[15], (F2,)),
        g3=1.0 + nrm(ks[16], (F2,)), be3=nrm(ks[17], (F2,)),
        m3=nrm(ks[18], (F2,)), v3=1.0 + 0.3 * jax.random.uniform(ks[19], (F2,)),
        # Dense
        wd=nrm(ks[20], (nc, Fd)), bd=nrm(ks[21], (nc,)),
    )


# --------------------------------------------------------------------------- pure-JAX reference
def ref_forward(x, p, cfg):
    eps = 1e-5
    dn = ('NCHW', 'OIHW', 'NCHW')
    hp = lax.Precision.HIGHEST

    def bn(y, g, b, m, v):
        return ((y - m[None, :, None, None]) / jnp.sqrt(v + eps)[None, :, None, None]
                * g[None, :, None, None] + b[None, :, None, None])

    def elu(y):
        return jnp.where(y > 0, y, jnp.exp(y) - 1.0)

    def poolw(y, k):
        n, c, h, w = y.shape
        wo = w // k
        return y[..., : wo * k].reshape(n, c, h, wo, k).mean(-1)

    y = lax.conv_general_dilated(x, p['w1'], (1, 1), ((0, 0), (cfg['pad1'], cfg['pad1'])),
                                 dimension_numbers=dn, precision=hp) + p['b1'][None, :, None, None]
    y = bn(y, p['g1'], p['be1'], p['m1'], p['v1'])
    y = lax.conv_general_dilated(y, p['w2'], (1, 1), ((0, 0), (0, 0)),
                                 dimension_numbers=dn, feature_group_count=cfg['F1'],
                                 precision=hp) + p['b2'][None, :, None, None]
    y = elu(bn(y, p['g2'], p['be2'], p['m2'], p['v2']))
    y = poolw(y, 4)
    y = lax.conv_general_dilated(y, p['w3'], (1, 1), ((0, 0), (cfg['pad3'], cfg['pad3'])),
                                 dimension_numbers=dn, feature_group_count=cfg['F2'],
                                 precision=hp) + p['b3'][None, :, None, None]
    y = lax.conv_general_dilated(y, p['w4'], (1, 1), ((0, 0), (0, 0)),
                                 dimension_numbers=dn, precision=hp) + p['b4'][None, :, None, None]
    y = elu(bn(y, p['g3'], p['be3'], p['m3'], p['v3']))
    y = poolw(y, 8)
    flat = y.reshape(y.shape[0], -1)
    logits = jnp.dot(flat, p['wd'].T, precision=hp) + p['bd'][None, :]
    return jax.nn.softmax(logits, axis=1)


# --------------------------------------------------------------------------- main
if __name__ == "__main__":
    # Small config consistent with the module: fs=32, signal_length=64 makes the
    # flattened size equal F2 * round(signal_length/32), as the Linear layer requires.
    cfg = make_config(num_input=1, channel=4, F1=4, D=2, fs=32, num_class=3, signal_length=64)

    key = jax.random.PRNGKey(0)
    kx, kp = jax.random.split(key)
    N = 2
    x = jax.random.normal(kx, (N, cfg['num_input'], cfg['channel'], cfg['W']), jnp.float32)
    params = init_params(kp, cfg)

    out = jax.block_until_ready(eegnet_forward(x, params, cfg))
    ref = jax.block_until_ready(ref_forward(x, params, cfg))

    assert out.shape == (N, cfg['num_class'])
    # bf16 MXU operands (f32 accumulation) vs the f32 HIGHEST reference:
    # loosened but still-meaningful tolerance on the softmax probabilities.
    np.testing.assert_allclose(np.asarray(out), np.asarray(ref), rtol=2e-2, atol=2e-3)
    assert np.allclose(np.asarray(out).sum(axis=1), 1.0, atol=1e-3)
    print("KERNEL_OK")
</pallas_src>

<mosaic_0001>
module attributes {stable_mosaic.version = 11 : i64} {
  func.func @kernel(%arg0: i32, %arg1: memref<8x256xbf16, #tpu.memory_space<vmem>>, %arg2: memref<256x512xbf16, #tpu.memory_space<vmem>>, %arg3: memref<1x512xf32, #tpu.memory_space<vmem>>, %arg4: memref<512x128xbf16, #tpu.memory_space<vmem>>, %arg5: memref<1x128xf32, #tpu.memory_space<vmem>>, %arg6: memref<128x3xbf16, #tpu.memory_space<vmem>>, %arg7: memref<1x3xf32, #tpu.memory_space<vmem>>, %arg8: memref<8x3xf32, #tpu.memory_space<vmem>>) attributes {dimension_semantics = [#tpu.dimension_semantics<parallel>], iteration_bounds = array<i64: 1>, scalar_prefetch = 0 : i64, scratch_operands = 0 : i64, tpu.core_type = #tpu.core_type<tc>, window_params = [{transform_indices = @transform_0, window_bounds = array<i64: 8, 256>}, {pipeline_mode = #tpu.pipeline_mode<synchronous>, transform_indices = @transform_1, window_bounds = array<i64: 256, 512>}, {pipeline_mode = #tpu.pipeline_mode<synchronous>, transform_indices = @transform_2, window_bounds = array<i64: 1, 512>}, {pipeline_mode = #tpu.pipeline_mode<synchronous>, transform_indices = @transform_3, window_bounds = array<i64: 512, 128>}, {pipeline_mode = #tpu.pipeline_mode<synchronous>, transform_indices = @transform_4, window_bounds = array<i64: 1, 128>}, {pipeline_mode = #tpu.pipeline_mode<synchronous>, transform_indices = @transform_5, window_bounds = array<i64: 128, 3>}, {pipeline_mode = #tpu.pipeline_mode<synchronous>, transform_indices = @transform_6, window_bounds = array<i64: 1, 3>}, {transform_indices = @transform_7, window_bounds = array<i64: 8, 3>}]} {
    %c0 = arith.constant 0 : index
    %c0_0 = arith.constant 0 : index
    %0 = vector.load %arg1[%c0, %c0_0] : memref<8x256xbf16, #tpu.memory_space<vmem>>, vector<8x256xbf16>
    %c0_1 = arith.constant 0 : index
    %c0_2 = arith.constant 0 : index
    %1 = vector.load %arg2[%c0_1, %c0_2] : memref<256x512xbf16, #tpu.memory_space<vmem>>, vector<256x512xbf16>
    %cst = arith.constant dense<0.000000e+00> : vector<8x512xf32>
    %2 = tpu.matmul %0, %1, %cst {dimension_numbers = #tpu.dot_dimension_numbers<[1], [0], [0], [1], [0, 0, 1, 1], [], []>} : vector<8x256xbf16>, vector<256x512xbf16>, vector<8x512xf32> -> vector<8x512xf32>
    %c0_3 = arith.constant 0 : index
    %c0_4 = arith.constant 0 : index
    %3 = vector.load %arg3[%c0_3, %c0_4] : memref<1x512xf32, #tpu.memory_space<vmem>>, vector<1x512xf32>
    %4 = vector.broadcast %3 : vector<1x512xf32> to vector<8x512xf32>
    %5 = arith.addf %2, %4 : vector<8x512xf32>
    %cst_5 = arith.constant 0.000000e+00 : f32
    %6 = vector.broadcast %cst_5 : f32 to vector<8x512xf32>
    %7 = arith.cmpf ogt, %5, %6 : vector<8x512xf32>
    %cst_6 = arith.constant 0.000000e+00 : f32
    %8 = vector.broadcast %cst_6 : f32 to vector<8x512xf32>
    %9 = arith.minimumf %5, %8 : vector<8x512xf32>
    %10 = math.exp %9 : vector<8x512xf32>
    %cst_7 = arith.constant 1.000000e+00 : f32
    %11 = vector.broadcast %cst_7 : f32 to vector<8x512xf32>
    %12 = arith.subf %10, %11 : vector<8x512xf32>
    %13 = arith.select %7, %5, %12 : vector<8x512xi1>, vector<8x512xf32>
    %14 = arith.truncf %13 : vector<8x512xf32> to vector<8x512xbf16>
    %c0_8 = arith.constant 0 : index
    %c0_9 = arith.constant 0 : index
    %15 = vector.load %arg4[%c0_8, %c0_9] : memref<512x128xbf16, #tpu.memory_space<vmem>>, vector<512x128xbf16>
    %cst_10 = arith.constant dense<0.000000e+00> : vector<8x128xf32>
    %16 = tpu.matmul %14, %15, %cst_10 {dimension_numbers = #tpu.dot_dimension_numbers<[1], [0], [0], [1], [0, 0, 1, 1], [], []>} : vector<8x512xbf16>, vector<512x128xbf16>, vector<8x128xf32> -> vector<8x128xf32>
    %c0_11 = arith.constant 0 : index
    %c0_12 = arith.constant 0 : index
    %17 = vector.load %arg5[%c0_11, %c0_12] : memref<1x128xf32, #tpu.memory_space<vmem>>, vector<1x128xf32>
    %18 = vector.broadcast %17 : vector<1x128xf32> to vector<8x128xf32>
    %19 = arith.addf %16, %18 : vector<8x128xf32>
    %cst_13 = arith.constant 0.000000e+00 : f32
    %20 = vector.broadcast %cst_13 : f32 to vector<8x128xf32>
    %21 = arith.cmpf ogt, %19, %20 : vector<8x128xf32>
    %cst_14 = arith.constant 0.000000e+00 : f32
    %22 = vector.broadcast %cst_14 : f32 to vector<8x128xf32>
    %23 = arith.minimumf %19, %22 : vector<8x128xf32>
    %24 = math.exp %23 : vector<8x128xf32>
    %cst_15 = arith.constant 1.000000e+00 : f32
    %25 = vector.broadcast %cst_15 : f32 to vector<8x128xf32>
    %26 = arith.subf %24, %25 : vector<8x128xf32>
    %27 = arith.select %21, %19, %26 : vector<8x128xi1>, vector<8x128xf32>
    %28 = arith.truncf %27 : vector<8x128xf32> to vector<8x128xbf16>
    %c0_16 = arith.constant 0 : index
    %c0_17 = arith.constant 0 : index
    %29 = vector.load %arg6[%c0_16, %c0_17] : memref<128x3xbf16, #tpu.memory_space<vmem>>, vector<128x3xbf16>
    %cst_18 = arith.constant dense<0.000000e+00> : vector<8x3xf32>
    %30 = tpu.matmul %28, %29, %cst_18 {dimension_numbers = #tpu.dot_dimension_numbers<[1], [0], [0], [1], [0, 0, 1, 1], [], []>} : vector<8x128xbf16>, vector<128x3xbf16>, vector<8x3xf32> -> vector<8x3xf32>
    %c0_19 = arith.constant 0 : index
    %c0_20 = arith.constant 0 : index
    %31 = vector.load %arg7[%c0_19, %c0_20] : memref<1x3xf32, #tpu.memory_space<vmem>>, vector<1x3xf32>
    %32 = vector.broadcast %31 : vector<1x3xf32> to vector<8x3xf32>
    %33 = arith.addf %30, %32 : vector<8x3xf32>
    %cst_21 = arith.constant dense<0xFF800000> : vector<8xf32>
    %34 = vector.multi_reduction <maximumf>, %33, %cst_21 [1] : vector<8x3xf32> to vector<8xf32>
    %35 = vector.shape_cast %34 : vector<8xf32> to vector<8x1xf32>
    %36 = vector.broadcast %35 : vector<8x1xf32> to vector<8x3xf32>
    %37 = arith.subf %33, %36 : vector<8x3xf32>
    %38 = math.exp %37 : vector<8x3xf32>
    %cst_22 = arith.constant dense<0.000000e+00> : vector<8xf32>
    %39 = vector.multi_reduction <add>, %38, %cst_22 [1] : vector<8x3xf32> to vector<8xf32>
    %40 = vector.shape_cast %39 : vector<8xf32> to vector<8x1xf32>
    %41 = tpu.reciprocal %40 {approx = true} : vector<8x1xf32> -> vector<8x1xf32>
    %42 = vector.broadcast %41 : vector<8x1xf32> to vector<8x3xf32>
    %43 = arith.mulf %38, %42 : vector<8x3xf32>
    %c0_23 = arith.constant 0 : index
    %c0_24 = arith.constant 0 : index
    %44 = vector.load %arg8[%c0_23, %c0_24] : memref<8x3xf32, #tpu.memory_space<vmem>>, vector<8x3xf32>
    tpu.vector_store %arg8[%c0_23, %c0_24], %43 {strides = array<i32>} : memref<8x3xf32, #tpu.memory_space<vmem>>, vector<8x3xf32>,
    return
  }
  func.func @transform_0(%arg0: i32) -> (i32, i32) {
    %c0_i32 = arith.constant 0 : i32
    %c0_i32_0 = arith.constant 0 : i32
    return %arg0, %c0_i32 : i32, i32
  }
  func.func @transform_1(%arg0: i32) -> (i32, i32) {
    %c0_i32 = arith.constant 0 : i32
    %c0_i32_0 = arith.constant 0 : i32
    %c0_i32_1 = arith.constant 0 : i32
    return %c0_i32, %c0_i32_0 : i32, i32
  }
  func.func @transform_2(%arg0: i32) -> (i32, i32) {
    %c0_i32 = arith.constant 0 : i32
    %c0_i32_0 = arith.constant 0 : i32
    %c0_i32_1 = arith.constant 0 : i32
    return %c0_i32, %c0_i32_0 : i32, i32
  }
  func.func @transform_3(%arg0: i32) -> (i32, i32) {
    %c0_i32 = arith.constant 0 : i32
    %c0_i32_0 = arith.constant 0 : i32
    %c0_i32_1 = arith.constant 0 : i32
    return %c0_i32, %c0_i32_0 : i32, i32
  }
  func.func @transform_4(%arg0: i32) -> (i32, i32) {
    %c0_i32 = arith.constant 0 : i32
    %c0_i32_0 = arith.constant 0 : i32
    %c0_i32_1 = arith.constant 0 : i32
    return %c0_i32, %c0_i32_0 : i32, i32
  }
  func.func @transform_5(%arg0: i32) -> (i32, i32) {
    %c0_i32 = arith.constant 0 : i32
    %c0_i32_0 = arith.constant 0 : i32
    %c0_i32_1 = arith.constant 0 : i32
    return %c0_i32, %c0_i32_0 : i32, i32
  }
  func.func @transform_6(%arg0: i32) -> (i32, i32) {
    %c0_i32 = arith.constant 0 : i32
    %c0_i32_0 = arith.constant 0 : i32
    %c0_i32_1 = arith.constant 0 : i32
    return %c0_i32, %c0_i32_0 : i32, i32
  }
  func.func @transform_7(%arg0: i32) -> (i32, i32) {
    %c0_i32 = arith.constant 0 : i32
    %c0_i32_0 = arith.constant 0 : i32
    return %arg0, %c0_i32 : i32, i32
  }
}

module attributes {stable_mosaic.version = 11 : i64} {
  func.func @kernel(%arg0: i32, %arg1: memref<8x256xbf16, #tpu.memory_space<vmem>>, %arg2: memref<256x512xbf16, #tpu.memory_space<vmem>>, %arg3: memref<1x512xf32, #tpu.memory_space<vmem>>, %arg4: memref<512x128xbf16, #tpu.memory_space<vmem>>, %arg5: memref<1x128xf32, #tpu.memory_space<vmem>>, %arg6: memref<128x3xbf16, #tpu.memory_space<vmem>>, %arg7: memref<1x3xf32, #tpu.memory_space<vmem>>, %arg8: memref<8x3xf32, #tpu.memory_space<vmem>>) attributes {dimension_semantics = [#tpu.dimension_semantics<parallel>], iteration_bounds = array<i64: 1>, scalar_prefetch = 0 : i64, scratch_operands = 0 : i64, tpu.core_type = #tpu.core_type<tc>, window_params = [{transform_indices = @transform_0, window_bounds = array<i64: 8, 256>}, {pipeline_mode = #tpu.pipeline_mode<synchronous>, transform_indices = @transform_1, window_bounds = array<i64: 256, 512>}, {pipeline_mode = #tpu.pipeline_mode<synchronous>, transform_indices = @transform_2, window_bounds = array<i64: 1, 512>}, {pipeline_mode = #tpu.pipeline_mode<synchronous>, transform_indices = @transform_3, window_bounds = array<i64: 512, 128>}, {pipeline_mode = #tpu.pipeline_mode<synchronous>, transform_indices = @transform_4, window_bounds = array<i64: 1, 128>}, {pipeline_mode = #tpu.pipeline_mode<synchronous>, transform_indices = @transform_5, window_bounds = array<i64: 128, 3>}, {pipeline_mode = #tpu.pipeline_mode<synchronous>, transform_indices = @transform_6, window_bounds = array<i64: 1, 3>}, {transform_indices = @transform_7, window_bounds = array<i64: 8, 3>}]} {
    %c0 = arith.constant 0 : index
    %c0_0 = arith.constant 0 : index
    %0 = vector.load %arg1[%c0, %c0_0] : memref<8x256xbf16, #tpu.memory_space<vmem>>, vector<8x256xbf16>
    %c0_1 = arith.constant 0 : index
    %c0_2 = arith.constant 0 : index
    %1 = vector.load %arg2[%c0_1, %c0_2] : memref<256x512xbf16, #tpu.memory_space<vmem>>, vector<256x512xbf16>
    %cst = arith.constant dense<0.000000e+00> : vector<8x512xf32>
    %2 = tpu.matmul %0, %1, %cst {dimension_numbers = #tpu.dot_dimension_numbers<[1], [0], [0], [1], [0, 0, 1, 1], [], []>} : vector<8x256xbf16>, vector<256x512xbf16>, vector<8x512xf32> -> vector<8x512xf32>
    %c0_3 = arith.constant 0 : index
    %c0_4 = arith.constant 0 : index
    %3 = vector.load %arg3[%c0_3, %c0_4] : memref<1x512xf32, #tpu.memory_space<vmem>>, vector<1x512xf32>
    %4 = vector.broadcast %3 : vector<1x512xf32> to vector<8x512xf32>
    %5 = arith.addf %2, %4 : vector<8x512xf32>
    %cst_5 = arith.constant 0.000000e+00 : f32
    %6 = vector.broadcast %cst_5 : f32 to vector<8x512xf32>
    %7 = arith.cmpf ogt, %5, %6 : vector<8x512xf32>
    %cst_6 = arith.constant 0.000000e+00 : f32
    %8 = vector.broadcast %cst_6 : f32 to vector<8x512xf32>
    %9 = arith.minimumf %5, %8 : vector<8x512xf32>
    %10 = math.exp %9 : vector<8x512xf32>
    %cst_7 = arith.constant 1.000000e+00 : f32
    %11 = vector.broadcast %cst_7 : f32 to vector<8x512xf32>
    %12 = arith.subf %10, %11 : vector<8x512xf32>
    %13 = arith.select %7, %5, %12 : vector<8x512xi1>, vector<8x512xf32>
    %14 = arith.truncf %13 : vector<8x512xf32> to vector<8x512xbf16>
    %c0_8 = arith.constant 0 : index
    %c0_9 = arith.constant 0 : index
    %15 = vector.load %arg4[%c0_8, %c0_9] : memref<512x128xbf16, #tpu.memory_space<vmem>>, vector<512x128xbf16>
    %cst_10 = arith.constant dense<0.000000e+00> : vector<8x128xf32>
    %16 = tpu.matmul %14, %15, %cst_10 {dimension_numbers = #tpu.dot_dimension_numbers<[1], [0], [0], [1], [0, 0, 1, 1], [], []>} : vector<8x512xbf16>, vector<512x128xbf16>, vector<8x128xf32> -> vector<8x128xf32>
    %c0_11 = arith.constant 0 : index
    %c0_12 = arith.constant 0 : index
    %17 = vector.load %arg5[%c0_11, %c0_12] : memref<1x128xf32, #tpu.memory_space<vmem>>, vector<1x128xf32>
    %18 = vector.broadcast %17 : vector<1x128xf32> to vector<8x128xf32>
    %19 = arith.addf %16, %18 : vector<8x128xf32>
    %cst_13 = arith.constant 0.000000e+00 : f32
    %20 = vector.broadcast %cst_13 : f32 to vector<8x128xf32>
    %21 = arith.cmpf ogt, %19, %20 : vector<8x128xf32>
    %cst_14 = arith.constant 0.000000e+00 : f32
    %22 = vector.broadcast %cst_14 : f32 to vector<8x128xf32>
    %23 = arith.minimumf %19, %22 : vector<8x128xf32>
    %24 = math.exp %23 : vector<8x128xf32>
    %cst_15 = arith.constant 1.000000e+00 : f32
    %25 = vector.broadcast %cst_15 : f32 to vector<8x128xf32>
    %26 = arith.subf %24, %25 : vector<8x128xf32>
    %27 = arith.select %21, %19, %26 : vector<8x128xi1>, vector<8x128xf32>
    %28 = arith.truncf %27 : vector<8x128xf32> to vector<8x128xbf16>
    %c0_16 = arith.constant 0 : index
    %c0_17 = arith.constant 0 : index
    %29 = vector.load %arg6[%c0_16, %c0_17] : memref<128x3xbf16, #tpu.memory_space<vmem>>, vector<128x3xbf16>
    %cst_18 = arith.constant dense<0.000000e+00> : vector<8x3xf32>
    %30 = tpu.matmul %28, %29, %cst_18 {dimension_numbers = #tpu.dot_dimension_numbers<[1], [0], [0], [1], [0, 0, 1, 1], [], []>} : vector<8x128xbf16>, vector<128x3xbf16>, vector<8x3xf32> -> vector<8x3xf32>
    %c0_19 = arith.constant 0 : index
    %c0_20 = arith.constant 0 : index
    %31 = vector.load %arg7[%c0_19, %c0_20] : memref<1x3xf32, #tpu.memory_space<vmem>>, vector<1x3xf32>
    %32 = vector.broadcast %31 : vector<1x3xf32> to vector<8x3xf32>
    %33 = arith.addf %30, %32 : vector<8x3xf32>
    %cst_21 = arith.constant dense<0xFF800000> : vector<8xf32>
    %34 = vector.multi_reduction <maximumf>, %33, %cst_21 [1] : vector<8x3xf32> to vector<8xf32>
    %35 = vector.shape_cast %34 : vector<8xf32> to vector<8x1xf32>
    %36 = vector.broadcast %35 : vector<8x1xf32> to vector<8x3xf32>
    %37 = arith.subf %33, %36 : vector<8x3xf32>
    %38 = math.exp %37 : vector<8x3xf32>
    %cst_22 = arith.constant dense<0.000000e+00> : vector<8xf32>
    %39 = vector.multi_reduction <add>, %38, %cst_22 [1] : vector<8x3xf32> to vector<8xf32>
    %40 = vector.shape_cast %39 : vector<8xf32> to vector<8x1xf32>
    %41 = tpu.reciprocal %40 {approx = true} : vector<8x1xf32> -> vector<8x1xf32>
    %42 = vector.broadcast %41 : vector<8x1xf32> to vector<8x3xf32>
    %43 = arith.mulf %38, %42 : vector<8x3xf32>
    %c0_23 = arith.constant 0 : index
    %c0_24 = arith.constant 0 : index
    %44 = vector.load %arg8[%c0_23, %c0_24] : memref<8x3xf32, #tpu.memory_space<vmem>>, vector<8x3xf32>
    tpu.vector_store %arg8[%c0_23, %c0_24], %43 {strides = array<i32>} : memref<8x3xf32, #tpu.memory_space<vmem>>, vector<8x3xf32>,
    return
  }
  func.func @transform_0(%arg0: i32) -> (i32, i32) {
    %c0_i32 = arith.constant 0 : i32
    %c0_i32_0 = arith.constant 0 : i32
    return %arg0, %c0_i32 : i32, i32
  }
  func.func @transform_1(%arg0: i32) -> (i32, i32) {
    %c0_i32 = arith.constant 0 : i32
    %c0_i32_0 = arith.constant 0 : i32
    %c0_i32_1 = arith.constant 0 : i32
    return %c0_i32, %c0_i32_0 : i32, i32
  }
  func.func @transform_2(%arg0: i32) -> (i32, i32) {
    %c0_i32 = arith.constant 0 : i32
    %c0_i32_0 = arith.constant 0 : i32
    %c0_i32_1 = arith.constant 0 : i32
    return %c0_i32, %c0_i32_0 : i32, i32
  }
  func.func @transform_3(%arg0: i32) -> (i32, i32) {
    %c0_i32 = arith.constant 0 : i32
    %c0_i32_0 = arith.constant 0 : i32
    %c0_i32_1 = arith.constant 0 : i32
    return %c0_i32, %c0_i32_0 : i32, i32
  }
  func.func @transform_4(%arg0: i32) -> (i32, i32) {
    %c0_i32 = arith.constant 0 : i32
    %c0_i32_0 = arith.constant 0 : i32
    %c0_i32_1 = arith.constant 0 : i32
    return %c0_i32, %c0_i32_0 : i32, i32
  }
  func.func @transform_5(%arg0: i32) -> (i32, i32) {
    %c0_i32 = arith.constant 0 : i32
    %c0_i32_0 = arith.constant 0 : i32
    %c0_i32_1 = arith.constant 0 : i32
    return %c0_i32, %c0_i32_0 : i32, i32
  }
  func.func @transform_6(%arg0: i32) -> (i32, i32) {
    %c0_i32 = arith.constant 0 : i32
    %c0_i32_0 = arith.constant 0 : i32
    %c0_i32_1 = arith.constant 0 : i32
    return %c0_i32, %c0_i32_0 : i32, i32
  }
  func.func @transform_7(%arg0: i32) -> (i32, i32) {
    %c0_i32 = arith.constant 0 : i32
    %c0_i32_0 = arith.constant 0 : i32
    return %arg0, %c0_i32 : i32, i32
  }
}

</mosaic_0001>

<llo_original>
// kernel: tpu_custom_call.1
$region0: #{tpu_custom_call.1}
  #allocation0 [shape = 'u32[]', space=smem, size = 0x4, offset = 0x4, fixed_abs, tag = 'smem constant byte address 0x4 - core index']
  #allocation1 [shape = 'u32[144,128]{1,0:T(1,128)}', space=vmem, size = 0x12000, scoped, tag = 'internal scratch']
  %s0 = inlined_call_operand.vmem [shape: bf16[8,256], index: 0, kind: input, shape index: {}]
  %s1 = inlined_call_operand.hbm [shape: bf16[256,512], index: 1, kind: input, shape index: {}]
  %s2 = inlined_call_operand.vmem [shape: f32[1,512], index: 2, kind: input, shape index: {}]
  %s3 = inlined_call_operand.hbm [shape: bf16[512,128], index: 3, kind: input, shape index: {}]
  %s4 = inlined_call_operand.vmem [shape: f32[1,128], index: 4, kind: input, shape index: {}]
  %s5 = inlined_call_operand.vmem [shape: bf16[128,3], index: 5, kind: input, shape index: {}]
  %s6 = inlined_call_operand.vmem [shape: f32[1,3], index: 6, kind: input, shape index: {}]
  %s7 = inlined_call_operand.vmem [shape: f32[8,3], index: 7, kind: output, shape index: {}]
  %s8 = sld [smem:[#allocation0]]
  $region46: #{tpu_custom_call.1} parent=0
    _
  %s10 = ssub.s32 1, %s8
  %s11 = scalar_select 0, %s10, %s8
  $region1: #{tpu_custom_call.1} parent=0
    #allocation2 [shape = 'u8[262144]{0}', space=vmem, size = 0x40000, scoped, tag = 'input window, operand 1, single buffered']
    #allocation3 [shape = 's32[1]{0}', space=sflag, size = 0x4, scoped, tag = 'scoped memory for tpu_custom_call.1']
    #allocation4 [shape = 'u8[131072]{0}', space=vmem, size = 0x20000, scoped, tag = 'input window, operand 3, single buffered']
    #allocation5 [shape = 's32[1]{0}', space=sflag, size = 0x4, scoped, tag = 'scoped memory for tpu_custom_call.1']
    %12 = vsyncpa [#allocation3], 0
    %13 = vsyncpa [#allocation5], 0
    // Predicated region
    $region2: #{tpu_custom_call.1} parent=1 // pred_check
      _
    $region3: #{tpu_custom_call.1} parent=1 // pred_check_branch
      %15 = sbr.rel (0) target = $region5
    $region4: #{tpu_custom_call.1} parent=1 // pred_region
      _
    $region5: #{tpu_custom_call.1} parent=1 // pred_fallthru
      _
    // Predicated region
    $region6: #{tpu_custom_call.1} parent=1 // pred_check
      _
    $region7: #{tpu_custom_call.1} parent=1 // pred_check_branch
      %17 = sbr.rel (0) target = $region9
    $region8: #{tpu_custom_call.1} parent=1 // pred_region
      %s19 = ssub.s32 8192, 8192
      %20 = vsyncadd [#allocation3], %s19
      %s21 = sshll.u32 [#allocation2], 4
      %s22 = int_to_ptr.vmem [resolvable:$true] %s21
      %27 = dma.hbm_to_vmem [thread:$0]  %s1, 8192, %s22, [#allocation3], 256, 256, 16
    $region9: #{tpu_custom_call.1} parent=1 // pred_fallthru
      _
    // Predicated region
    $region10: #{tpu_custom_call.1} parent=1 // pred_check
      _
    $region11: #{tpu_custom_call.1} parent=1 // pred_check_branch
      %29 = sbr.rel (0) target = $region13
    $region12: #{tpu_custom_call.1} parent=1 // pred_region
      _
    $region13: #{tpu_custom_call.1} parent=1 // pred_fallthru
      _
    // Predicated region
    $region14: #{tpu_custom_call.1} parent=1 // pred_check
      _
    $region15: #{tpu_custom_call.1} parent=1 // pred_check_branch
      %31 = sbr.rel (0) target = $region17
    $region16: #{tpu_custom_call.1} parent=1 // pred_region
      %s33 = ssub.s32 4096, 4096
      %34 = vsyncadd [#allocation5], %s33
      %s35 = sshll.u32 [#allocation4], 4
      %s36 = int_to_ptr.vmem [resolvable:$true] %s35
      %41 = dma.hbm_to_vmem [thread:$0]  %s3, 4096, %s36, [#allocation5], 64, 64, 4
    $region17: #{tpu_custom_call.1} parent=1 // pred_fallthru
      _
    // Predicated region
    $region18: #{tpu_custom_call.1} parent=1 // pred_check
      _
    $region19: #{tpu_custom_call.1} parent=1 // pred_check_branch
      %43 = sbr.rel (0) target = $region21
    $region20: #{tpu_custom_call.1} parent=1 // pred_region
      _
    $region21: #{tpu_custom_call.1} parent=1 // pred_fallthru
      _
    // Predicated region
    $region22: #{tpu_custom_call.1} parent=1 // pred_check
      _
    $region23: #{tpu_custom_call.1} parent=1 // pred_check_branch
      %45 = sbr.rel (0) target = $region25
    $region24: #{tpu_custom_call.1} parent=1 // pred_region
      _
    $region25: #{tpu_custom_call.1} parent=1 // pred_fallthru
      _
    // Predicated region
    $region26: #{tpu_custom_call.1} parent=1 // pred_check
      _
    $region27: #{tpu_custom_call.1} parent=1 // pred_check_branch
      %47 = sbr.rel (0) target = $region29
    $region28: #{tpu_custom_call.1} parent=1 // pred_region
      _
    $region29: #{tpu_custom_call.1} parent=1 // pred_fallthru
      _
    // Predicated region
    $region30: #{tpu_custom_call.1} parent=1 // pred_check
      _
    $region31: #{tpu_custom_call.1} parent=1 // pred_check_branch
      %49 = sbr.rel (0) target = $region33
    $region32: #{tpu_custom_call.1} parent=1 // pred_region
      %50 = dma.done [#allocation3], 8192
    $region33: #{tpu_custom_call.1} parent=1 // pred_fallthru
      _
    // Predicated region
    $region34: #{tpu_custom_call.1} parent=1 // pred_check
      _
    $region35: #{tpu_custom_call.1} parent=1 // pred_check_branch
      %52 = sbr.rel (0) target = $region37
    $region36: #{tpu_custom_call.1} parent=1 // pred_region
      %53 = dma.done [#allocation5], 4096
    $region37: #{tpu_custom_call.1} parent=1 // pred_fallthru
      _
    %v55 = vld [vmem:[%s0] sm:$0xff]
    %v56 = vld [vmem:[#allocation2] sm:$0xff]
    %v57 = vld [vmem:[#allocation2 + $0x8] sm:$0xff]
    %v58 = vld [vmem:[#allocation2 + $0x10] sm:$0xff]
    %v59 = vld [vmem:[#allocation2 + $0x18] sm:$0xff]
    %v60 = vld [vmem:[#allocation2 + $0x20] sm:$0xff]
    %v61 = vld [vmem:[#allocation2 + $0x28] sm:$0xff]
    %v62 = vld [vmem:[#allocation2 + $0x30] sm:$0xff]
    %v63 = vld [vmem:[#allocation2 + $0x38] sm:$0xff]
    %v64 = vld [vmem:[#allocation2 + $0x40] sm:$0xff]
    %v65 = vld [vmem:[#allocation2 + $0x48] sm:$0xff]
    %v66 = vld [vmem:[#allocation2 + $0x50] sm:$0xff]
    %v67 = vld [vmem:[#allocation2 + $0x58] sm:$0xff]
    %v68 = vld [vmem:[#allocation2 + $0x60] sm:$0xff]
    %v69 = vld [vmem:[#allocation2 + $0x68] sm:$0xff]
    %v70 = vld [vmem:[#allocation2 + $0x70] sm:$0xff]
    %v71 = vld [vmem:[#allocation2 + $0x78] sm:$0xff]
    %v72 = vld [vmem:[#allocation2 + $0x80] sm:$0xff]
    %v73 = vld [vmem:[#allocation2 + $0x88] sm:$0xff]
    %v74 = vld [vmem:[#allocation2 + $0x90] sm:$0xff]
    %v75 = vld [vmem:[#allocation2 + $0x98] sm:$0xff]
    %v76 = vld [vmem:[#allocation2 + $0xa0] sm:$0xff]
    %v77 = vld [vmem:[#allocation2 + $0xa8] sm:$0xff]
    %v78 = vld [vmem:[#allocation2 + $0xb0] sm:$0xff]
    %v79 = vld [vmem:[#allocation2 + $0xb8] sm:$0xff]
    %v80 = vld [vmem:[#allocation2 + $0xc0] sm:$0xff]
    %v81 = vld [vmem:[#allocation2 + $0xc8] sm:$0xff]
    %v82 = vld [vmem:[#allocation2 + $0xd0] sm:$0xff]
    %v83 = vld [vmem:[#allocation2 + $0xd8] sm:$0xff]
    %v84 = vld [vmem:[#allocation2 + $0xe0] sm:$0xff]
    %v85 = vld [vmem:[#allocation2 + $0xe8] sm:$0xff]
    %v86 = vld [vmem:[#allocation2 + $0xf0] sm:$0xff]
    %v87 = vld [vmem:[#allocation2 + $0xf8] sm:$0xff]
    %v88 = vld [vmem:[#allocation2 + $0x100] sm:$0xff]
    %v89 = vld [vmem:[#allocation2 + $0x108] sm:$0xff]
    %v90 = vld [vmem:[#allocation2 + $0x110] sm:$0xff]
    %v91 = vld [vmem:[#allocation2 + $0x118] sm:$0xff]
    %v92 = vld [vmem:[#allocation2 + $0x120] sm:$0xff]
    %v93 = vld [vmem:[#allocation2 + $0x128] sm:$0xff]
    %v94 = vld [vmem:[#allocation2 + $0x130] sm:$0xff]
    %v95 = vld [vmem:[#allocation2 + $0x138] sm:$0xff]
    %v96 = vld [vmem:[#allocation2 + $0x140] sm:$0xff]
    %v97 = vld [vmem:[#allocation2 + $0x148] sm:$0xff]
    %v98 = vld [vmem:[#allocation2 + $0x150] sm:$0xff]
    %v99 = vld [vmem:[#allocation2 + $0x158] sm:$0xff]
    %v100 = vld [vmem:[#allocation2 + $0x160] sm:$0xff]
    %v101 = vld [vmem:[#allocation2 + $0x168] sm:$0xff]
    %v102 = vld [vmem:[#allocation2 + $0x170] sm:$0xff]
    %v103 = vld [vmem:[#allocation2 + $0x178] sm:$0xff]
    %v104 = vld [vmem:[#allocation2 + $0x180] sm:$0xff]
    %v105 = vld [vmem:[#allocation2 + $0x188] sm:$0xff]
    %v106 = vld [vmem:[#allocation2 + $0x190] sm:$0xff]
    %v107 = vld [vmem:[#allocation2 + $0x198] sm:$0xff]
    %v108 = vld [vmem:[#allocation2 + $0x1a0] sm:$0xff]
    %v109 = vld [vmem:[#allocation2 + $0x1a8] sm:$0xff]
    %v110 = vld [vmem:[#allocation2 + $0x1b0] sm:$0xff]
    %v111 = vld [vmem:[#allocation2 + $0x1b8] sm:$0xff]
    %v112 = vld [vmem:[#allocation2 + $0x1c0] sm:$0xff]
    %v113 = vld [vmem:[#allocation2 + $0x1c8] sm:$0xff]
    %v114 = vld [vmem:[#allocation2 + $0x1d0] sm:$0xff]
    %v115 = vld [vmem:[#allocation2 + $0x1d8] sm:$0xff]
    %v116 = vld [vmem:[#allocation2 + $0x1e0] sm:$0xff]
    %v117 = vld [vmem:[#allocation2 + $0x1e8] sm:$0xff]
    %v118 = vld [vmem:[#allocation2 + $0x1f0] sm:$0xff]
    %v119 = vld [vmem:[#allocation2 + $0x1f8] sm:$0xff]
    %v120 = vld [vmem:[%s2] sm:$0xf]
    %v122 = vlaneseq
    %v123 = vshrl.u32 %v122, 7
    %v124 = vsub.s32 0, %v123
    %v125 = vrot.slane %v120, %v124
    %v126 = vlaneseq
    %v127 = vshrl.u32 %v126, 7
    %v128 = vsub.s32 1, %v127
    %v129 = vrot.slane %v120, %v128
    %v130 = vlaneseq
    %v131 = vshrl.u32 %v130, 7
    %v132 = vsub.s32 2, %v131
    %v133 = vrot.slane %v120, %v132
    %v134 = vlaneseq
    %v135 = vshrl.u32 %v134, 7
    %v136 = vsub.s32 3, %v135
    %v137 = vrot.slane %v120, %v136
    %v143 = vunpack.c.l.b16 %v55
    %v144 = vunpack.c.h.b16 %v55
    %v145 = vpack.c.b16 %v143, %v143
    %v146 = vpack.c.b16 %v144, %v144
    %v213 = vunpack.c.l.b16 %v56
    %v214 = vunpack.c.h.b16 %v56
    %v215 = vunpack.c.l.b16 %v57
    %v216 = vunpack.c.h.b16 %v57
    %v217 = vunpack.c.l.b16 %v58
    %v218 = vunpack.c.h.b16 %v58
    %v219 = vunpack.c.l.b16 %v59
    %v220 = vunpack.c.h.b16 %v59
    %v221 = vunpack.c.l.b16 %v60
    %v222 = vunpack.c.h.b16 %v60
    %v223 = vunpack.c.l.b16 %v61
    %v224 = vunpack.c.h.b16 %v61
    %v225 = vunpack.c.l.b16 %v62
    %v226 = vunpack.c.h.b16 %v62
    %v227 = vunpack.c.l.b16 %v63
    %v228 = vunpack.c.h.b16 %v63
    %v229 = vunpack.c.l.b16 %v64
    %v230 = vunpack.c.h.b16 %v64
    %v231 = vunpack.c.l.b16 %v65
    %v232 = vunpack.c.h.b16 %v65
    %v233 = vunpack.c.l.b16 %v66
    %v234 = vunpack.c.h.b16 %v66
    %v235 = vunpack.c.l.b16 %v67
    %v236 = vunpack.c.h.b16 %v67
    %v237 = vunpack.c.l.b16 %v68
    %v238 = vunpack.c.h.b16 %v68
    %v239 = vunpack.c.l.b16 %v69
    %v240 = vunpack.c.h.b16 %v69
    %v241 = vunpack.c.l.b16 %v70
    %v242 = vunpack.c.h.b16 %v70
    %v243 = vunpack.c.l.b16 %v71
    %v244 = vunpack.c.h.b16 %v71
    %v245 = vunpack.c.l.b16 %v72
    %v246 = vunpack.c.h.b16 %v72
    %v247 = vunpack.c.l.b16 %v73
    %v248 = vunpack.c.h.b16 %v73
    %v249 = vunpack.c.l.b16 %v74
    %v250 = vunpack.c.h.b16 %v74
    %v251 = vunpack.c.l.b16 %v75
    %v252 = vunpack.c.h.b16 %v75
    %v253 = vunpack.c.l.b16 %v76
    %v254 = vunpack.c.h.b16 %v76
    %v255 = vunpack.c.l.b16 %v77
    %v256 = vunpack.c.h.b16 %v77
    %v257 = vunpack.c.l.b16 %v78
    %v258 = vunpack.c.h.b16 %v78
    %v259 = vunpack.c.l.b16 %v79
    %v260 = vunpack.c.h.b16 %v79
    %v261 = vunpack.c.l.b16 %v80
    %v262 = vunpack.c.h.b16 %v80
    %v263 = vunpack.c.l.b16 %v81
    %v264 = vunpack.c.h.b16 %v81
    %v265 = vunpack.c.l.b16 %v82
    %v266 = vunpack.c.h.b16 %v82
    %v267 = vunpack.c.l.b16 %v83
    %v268 = vunpack.c.h.b16 %v83
    %v269 = vunpack.c.l.b16 %v84
    %v270 = vunpack.c.h.b16 %v84
    %v271 = vunpack.c.l.b16 %v85
    %v272 = vunpack.c.h.b16 %v85
    %v273 = vunpack.c.l.b16 %v86
    %v274 = vunpack.c.h.b16 %v86
    %v275 = vunpack.c.l.b16 %v87
    %v276 = vunpack.c.h.b16 %v87
    %v277 = vunpack.c.l.b16 %v88
    %v278 = vunpack.c.h.b16 %v88
    %v279 = vunpack.c.l.b16 %v89
    %v280 = vunpack.c.h.b16 %v89
    %v281 = vunpack.c.l.b16 %v90
    %v282 = vunpack.c.h.b16 %v90
    %v283 = vunpack.c.l.b16 %v91
    %v284 = vunpack.c.h.b16 %v91
    %v285 = vunpack.c.l.b16 %v92
    %v286 = vunpack.c.h.b16 %v92
    %v287 = vunpack.c.l.b16 %v93
    %v288 = vunpack.c.h.b16 %v93
    %v289 = vunpack.c.l.b16 %v94
    %v290 = vunpack.c.h.b16 %v94
    %v291 = vunpack.c.l.b16 %v95
    %v292 = vunpack.c.h.b16 %v95
    %v293 = vunpack.c.l.b16 %v96
    %v294 = vunpack.c.h.b16 %v96
    %v295 = vunpack.c.l.b16 %v97
    %v296 = vunpack.c.h.b16 %v97
    %v297 = vunpack.c.l.b16 %v98
    %v298 = vunpack.c.h.b16 %v98
    %v299 = vunpack.c.l.b16 %v99
    %v300 = vunpack.c.h.b16 %v99
    %v301 = vunpack.c.l.b16 %v100
    %v302 = vunpack.c.h.b16 %v100
    %v303 = vunpack.c.l.b16 %v101
    %v304 = vunpack.c.h.b16 %v101
    %v305 = vunpack.c.l.b16 %v102
    %v306 = vunpack.c.h.b16 %v102
    %v307 = vunpack.c.l.b16 %v103
    %v308 = vunpack.c.h.b16 %v103
    %v309 = vunpack.c.l.b16 %v104
    %v310 = vunpack.c.h.b16 %v104
    %v311 = vunpack.c.l.b16 %v105
    %v312 = vunpack.c.h.b16 %v105
    %v313 = vunpack.c.l.b16 %v106
    %v314 = vunpack.c.h.b16 %v106
    %v315 = vunpack.c.l.b16 %v107
    %v316 = vunpack.c.h.b16 %v107
    %v317 = vunpack.c.l.b16 %v108
    %v318 = vunpack.c.h.b16 %v108
    %v319 = vunpack.c.l.b16 %v109
    %v320 = vunpack.c.h.b16 %v109
    %v321 = vunpack.c.l.b16 %v110
    %v322 = vunpack.c.h.b16 %v110
    %v323 = vunpack.c.l.b16 %v111
    %v324 = vunpack.c.h.b16 %v111
    %v325 = vunpack.c.l.b16 %v112
    %v326 = vunpack.c.h.b16 %v112
    %v327 = vunpack.c.l.b16 %v113
    %v328 = vunpack.c.h.b16 %v113
    %v329 = vunpack.c.l.b16 %v114
    %v330 = vunpack.c.h.b16 %v114
    %v331 = vunpack.c.l.b16 %v115
    %v332 = vunpack.c.h.b16 %v115
    %v333 = vunpack.c.l.b16 %v116
    %v334 = vunpack.c.h.b16 %v116
    %v335 = vunpack.c.l.b16 %v117
    %v336 = vunpack.c.h.b16 %v117
    %v337 = vunpack.c.l.b16 %v118
    %v338 = vunpack.c.h.b16 %v118
    %v339 = vunpack.c.l.b16 %v119
    %v340 = vunpack.c.h.b16 %v119
    %v341 = vpack.c.b16 %v217, %v213
    %v342 = vpack.c.b16 %v218, %v214
    %v343 = vpack.c.b16 %v219, %v215
    %v344 = vpack.c.b16 %v220, %v216
    %v345 = vpack.c.b16 %v225, %v221
    %v346 = vpack.c.b16 %v226, %v222
    %v347 = vpack.c.b16 %v227, %v223
    %v348 = vpack.c.b16 %v228, %v224
    %v349 = vpack.c.b16 %v233, %v229
    %v350 = vpack.c.b16 %v234, %v230
    %v351 = vpack.c.b16 %v235, %v231
    %v352 = vpack.c.b16 %v236, %v232
    %v353 = vpack.c.b16 %v241, %v237
    %v354 = vpack.c.b16 %v242, %v238
    %v355 = vpack.c.b16 %v243, %v239
    %v356 = vpack.c.b16 %v244, %v240
    %v357 = vpack.c.b16 %v249, %v245
    %v358 = vpack.c.b16 %v250, %v246
    %v359 = vpack.c.b16 %v251, %v247
    %v360 = vpack.c.b16 %v252, %v248
    %v361 = vpack.c.b16 %v257, %v253
    %v362 = vpack.c.b16 %v258, %v254
    %v363 = vpack.c.b16 %v259, %v255
    %v364 = vpack.c.b16 %v260, %v256
    %v365 = vpack.c.b16 %v265, %v261
    %v366 = vpack.c.b16 %v266, %v262
    %v367 = vpack.c.b16 %v267, %v263
    %v368 = vpack.c.b16 %v268, %v264
    %v369 = vpack.c.b16 %v273, %v269
    %v370 = vpack.c.b16 %v274, %v270
    %v371 = vpack.c.b16 %v275, %v271
    %v372 = vpack.c.b16 %v276, %v272
    %v373 = vpack.c.b16 %v281, %v277
    %v374 = vpack.c.b16 %v282, %v278
    %v375 = vpack.c.b16 %v283, %v279
    %v376 = vpack.c.b16 %v284, %v280
    %v377 = vpack.c.b16 %v289, %v285
    %v378 = vpack.c.b16 %v290, %v286
    %v379 = vpack.c.b16 %v291, %v287
    %v380 = vpack.c.b16 %v292, %v288
    %v381 = vpack.c.b16 %v297, %v293
    %v382 = vpack.c.b16 %v298, %v294
    %v383 = vpack.c.b16 %v299, %v295
    %v384 = vpack.c.b16 %v300, %v296
    %v385 = vpack.c.b16 %v305, %v301
    %v386 = vpack.c.b16 %v306, %v302
    %v387 = vpack.c.b16 %v307, %v303
    %v388 = vpack.c.b16 %v308, %v304
    %v389 = vpack.c.b16 %v313, %v309
    %v390 = vpack.c.b16 %v314, %v310
    %v391 = vpack.c.b16 %v315, %v311
    %v392 = vpack.c.b16 %v316, %v312
    %v393 = vpack.c.b16 %v321, %v317
    %v394 = vpack.c.b16 %v322, %v318
    %v395 = vpack.c.b16 %v323, %v319
    %v396 = vpack.c.b16 %v324, %v320
    %v397 = vpack.c.b16 %v329, %v325
    %v398 = vpack.c.b16 %v330, %v326
    %v399 = vpack.c.b16 %v331, %v327
    %v400 = vpack.c.b16 %v332, %v328
    %v401 = vpack.c.b16 %v337, %v333
    %v402 = vpack.c.b16 %v338, %v334
    %v403 = vpack.c.b16 %v339, %v335
    %v404 = vpack.c.b16 %v340, %v336
    %469 = vmatprep.subr.bf16.mxu0 %v342
    %470 = vmatpush1.bf16.msra.mxu0 %v341
    %471 = vmatprep.subr.bf16.mxu0 %v346
    %472 = vmatpush1.bf16.msra.mxu0 %v345
    %473 = vmatprep.subr.bf16.mxu0 %v350
    %474 = vmatpush1.bf16.msra.mxu0 %v349
    %475 = vmatprep.subr.bf16.mxu0 %v354
    %476 = vmatpush1.bf16.msra.mxu0 %v353
    %477 = vmatprep.subr.bf16.mxu0 %v358
    %478 = vmatpush1.bf16.msra.mxu0 %v357
    %479 = vmatprep.subr.bf16.mxu0 %v362
    %480 = vmatpush1.bf16.msra.mxu0 %v361
    %481 = vmatprep.subr.bf16.mxu0 %v366
    %482 = vmatpush1.bf16.msra.mxu0 %v365
    %483 = vmatprep.subr.bf16.mxu0 %v370
    %484 = vmatpush1.bf16.msra.mxu0 %v369
    %485 = vmatprep.subr.bf16.mxu0 %v374
    %486 = vmatpush1.bf16.msra.mxu0 %v373
    %487 = vmatprep.subr.bf16.mxu0 %v378
    %488 = vmatpush1.bf16.msra.mxu0 %v377
    %489 = vmatprep.subr.bf16.mxu0 %v382
    %490 = vmatpush1.bf16.msra.mxu0 %v381
    %491 = vmatprep.subr.bf16.mxu0 %v386
    %492 = vmatpush1.bf16.msra.mxu0 %v385
    %493 = vmatprep.subr.bf16.mxu0 %v390
    %494 = vmatpush1.bf16.msra.mxu0 %v389
    %495 = vmatprep.subr.bf16.mxu0 %v394
    %496 = vmatpush1.bf16.msra.mxu0 %v393
    %497 = vmatprep.subr.bf16.mxu0 %v398
    %498 = vmatpush1.bf16.msra.mxu0 %v397
    %499 = vmatprep.subr.bf16.mxu0 %v402
    %500 = vmatpush1.bf16.msra.mxu0 %v401
    %501 = vmatprep.mubr.bf16.mxu0 %v146
    %502 = vmatmul.mubr.bf16.gmra.mrb[0].mxu0 %v145
    %v503 = vpop.f32.mrb[0].mxu0
    %v504 = vadd.f32 %v125, %v503
    %v505 = vpop.f32.mrb[0].mxu0
    %v506 = vadd.f32 %v129, %v505
    %v507 = vpop.f32.mrb[0].mxu0
    %v508 = vpop.f32.mrb[0].mxu0
    %509 = vdwg.mxu0
    %510 = vmatprep.subr.bf16.mxu0 %v344
    %511 = vmatpush1.bf16.msra.mxu0 %v343
    %512 = vmatprep.subr.bf16.mxu0 %v348
    %513 = vmatpush1.bf16.msra.mxu0 %v347
    %514 = vmatprep.subr.bf16.mxu0 %v352
    %515 = vmatpush1.bf16.msra.mxu0 %v351
    %516 = vmatprep.subr.bf16.mxu0 %v356
    %517 = vmatpush1.bf16.msra.mxu0 %v355
    %518 = vmatprep.subr.bf16.mxu0 %v360
    %519 = vmatpush1.bf16.msra.mxu0 %v359
    %520 = vmatprep.subr.bf16.mxu0 %v364
    %521 = vmatpush1.bf16.msra.mxu0 %v363
    %522 = vmatprep.subr.bf16.mxu0 %v368
    %523 = vmatpush1.bf16.msra.mxu0 %v367
    %524 = vmatprep.subr.bf16.mxu0 %v372
    %525 = vmatpush1.bf16.msra.mxu0 %v371
    %526 = vmatprep.subr.bf16.mxu0 %v376
    %527 = vmatpush1.bf16.msra.mxu0 %v375
    %528 = vmatprep.subr.bf16.mxu0 %v380
    %529 = vmatpush1.bf16.msra.mxu0 %v379
    %530 = vmatprep.subr.bf16.mxu0 %v384
    %531 = vmatpush1.bf16.msra.mxu0 %v383
    %532 = vmatprep.subr.bf16.mxu0 %v388
    %533 = vmatpush1.bf16.msra.mxu0 %v387
    %534 = vmatprep.subr.bf16.mxu0 %v392
    %535 = vmatpush1.bf16.msra.mxu0 %v391
    %536 = vmatprep.subr.bf16.mxu0 %v396
    %537 = vmatpush1.bf16.msra.mxu0 %v395
    %538 = vmatprep.subr.bf16.mxu0 %v400
    %539 = vmatpush1.bf16.msra.mxu0 %v399
    %540 = vmatprep.subr.bf16.mxu0 %v404
    %541 = vmatpush1.bf16.msra.mxu0 %v403
    %542 = vmatprep.mubr.bf16.mxu0 %v146
    %543 = vmatmul.mubr.bf16.gmra.mrb[0].mxu0 %v145
    %v544 = vpop.f32.mrb[0].mxu0
    %v545 = vadd.f32 %v133, %v544
    %v546 = vpop.f32.mrb[0].mxu0
    %v547 = vadd.f32 %v137, %v546
    %v548 = vpop.f32.mrb[0].mxu0
    %v549 = vpop.f32.mrb[0].mxu0
    %550 = vdwg.mxu0
    %vm551 = vcmp.gt.f32.partialorder %v504, 0.0
    %vm552 = vcmp.gt.f32.partialorder %v506, 0.0
    %vm553 = vcmp.gt.f32.partialorder %v545, 0.0
    %vm554 = vcmp.gt.f32.partialorder %v547, 0.0
    %v555 = vmin.f32 %v504, 0.0
    %v556 = vmin.f32 %v506, 0.0
    %v557 = vmin.f32 %v545, 0.0
    %v558 = vmin.f32 %v547, 0.0
    %v559 = vmul.f32 %v555, 1.442695
    %v560 = vpow.pop %v559
    %v561 = vmul.f32 %v556, 1.442695
    %v562 = vpow.pop %v561
    %v563 = vmul.f32 %v557, 1.442695
    %v564 = vpow.pop %v563
    %v565 = vmul.f32 %v558, 1.442695
    %v566 = vpow.pop %v565
    %v567 = vsub.f32 %v560, 1.0
    %v568 = vsub.f32 %v562, 1.0
    %v569 = vsub.f32 %v564, 1.0
    %v570 = vsub.f32 %v566, 1.0
    %v571 = vsel %vm551, %v504, %v567
    %v572 = vsel %vm552, %v506, %v568
    %v573 = vsel %vm553, %v545, %v569
    %v574 = vsel %vm554, %v547, %v570
    %v575 = vpack.c.bf16 %v571, %v571
    %v576 = vpack.c.bf16 %v572, %v572
    %v577 = vpack.c.bf16 %v573, %v573
    %v578 = vpack.c.bf16 %v574, %v574
    %v579 = vld [vmem:[#allocation4] sm:$0xf]
    %v580 = vld [vmem:[#allocation4 + $0x4] sm:$0xf]
    %v581 = vld [vmem:[#allocation4 + $0x8] sm:$0xf]
    %v582 = vld [vmem:[#allocation4 + $0xc] sm:$0xf]
    %v583 = vld [vmem:[#allocation4 + $0x10] sm:$0xf]
    %v584 = vld [vmem:[#allocation4 + $0x14] sm:$0xf]
    %v585 = vld [vmem:[#allocation4 + $0x18] sm:$0xf]
    %v586 = vld [vmem:[#allocation4 + $0x1c] sm:$0xf]
    %v587 = vld [vmem:[#allocation4 + $0x20] sm:$0xf]
    %v588 = vld [vmem:[#allocation4 + $0x24] sm:$0xf]
    %v589 = vld [vmem:[#allocation4 + $0x28] sm:$0xf]
    %v590 = vld [vmem:[#allocation4 + $0x2c] sm:$0xf]
    %v591 = vld [vmem:[#allocation4 + $0x30] sm:$0xf]
    %v592 = vld [vmem:[#allocation4 + $0x34] sm:$0xf]
    %v593 = vld [vmem:[#allocation4 + $0x38] sm:$0xf]
    %v594 = vld [vmem:[#allocation4 + $0x3c] sm:$0xf]
    %v595 = vld [vmem:[#allocation4 + $0x40] sm:$0xf]
    %v596 = vld [vmem:[#allocation4 + $0x44] sm:$0xf]
    %v597 = vld [vmem:[#allocation4 + $0x48] sm:$0xf]
    %v598 = vld [vmem:[#allocation4 + $0x4c] sm:$0xf]
    %v599 = vld [vmem:[#allocation4 + $0x50] sm:$0xf]
    %v600 = vld [vmem:[#allocation4 + $0x54] sm:$0xf]
    %v601 = vld [vmem:[#allocation4 + $0x58] sm:$0xf]
    %v602 = vld [vmem:[#allocation4 + $0x5c] sm:$0xf]
    %v603 = vld [vmem:[#allocation4 + $0x60] sm:$0xf]
    %v604 = vld [vmem:[#allocation4 + $0x64] sm:$0xf]
    %v605 = vld [vmem:[#allocation4 + $0x68] sm:$0xf]
    %v606 = vld [vmem:[#allocation4 + $0x6c] sm:$0xf]
    %v607 = vld [vmem:[#allocation4 + $0x70] sm:$0xf]
    %v608 = vld [vmem:[#allocation4 + $0x74] sm:$0xf]
    %v609 = vld [vmem:[#allocation4 + $0x78] sm:$0xf]
    %v610 = vld [vmem:[#allocation4 + $0x7c] sm:$0xf]
    %v611 = vld [vmem:[#allocation4 + $0x80] sm:$0xf]
    %v612 = vld [vmem:[#allocation4 + $0x84] sm:$0xf]
    %v613 = vld [vmem:[#allocation4 + $0x88] sm:$0xf]
    %v614 = vld [vmem:[#allocation4 + $0x8c] sm:$0xf]
    %v615 = vld [vmem:[#allocation4 + $0x90] sm:$0xf]
    %v616 = vld [vmem:[#allocation4 + $0x94] sm:$0xf]
    %v617 = vld [vmem:[#allocation4 + $0x98] sm:$0xf]
    %v618 = vld [vmem:[#allocation4 + $0x9c] sm:$0xf]
    %v619 = vld [vmem:[#allocation4 + $0xa0] sm:$0xf]
    %v620 = vld [vmem:[#allocation4 + $0xa4] sm:$0xf]
    %v621 = vld [vmem:[#allocation4 + $0xa8] sm:$0xf]
    %v622 = vld [vmem:[#allocation4 + $0xac] sm:$0xf]
    %v623 = vld [vmem:[#allocation4 + $0xb0] sm:$0xf]
    %v624 = vld [vmem:[#allocation4 + $0xb4] sm:$0xf]
    %v625 = vld [vmem:[#allocation4 + $0xb8] sm:$0xf]
    %v626 = vld [vmem:[#allocation4 + $0xbc] sm:$0xf]
    %v627 = vld [vmem:[#allocation4 + $0xc0] sm:$0xf]
    %v628 = vld [vmem:[#allocation4 + $0xc4] sm:$0xf]
    %v629 = vld [vmem:[#allocation4 + $0xc8] sm:$0xf]
    %v630 = vld [vmem:[#allocation4 + $0xcc] sm:$0xf]
    %v631 = vld [vmem:[#allocation4 + $0xd0] sm:$0xf]
    %v632 = vld [vmem:[#allocation4 + $0xd4] sm:$0xf]
    %v633 = vld [vmem:[#allocation4 + $0xd8] sm:$0xf]
    %v634 = vld [vmem:[#allocation4 + $0xdc] sm:$0xf]
    %v635 = vld [vmem:[#allocation4 + $0xe0] sm:$0xf]
    %v636 = vld [vmem:[#allocation4 + $0xe4] sm:$0xf]
    %v637 = vld [vmem:[#allocation4 + $0xe8] sm:$0xf]
    %v638 = vld [vmem:[#allocation4 + $0xec] sm:$0xf]
    %v639 = vld [vmem:[#allocation4 + $0xf0] sm:$0xf]
    %v640 = vld [vmem:[#allocation4 + $0xf4] sm:$0xf]
    %v641 = vld [vmem:[#allocation4 + $0xf8] sm:$0xf]
    %v642 = vld [vmem:[#allocation4 + $0xfc] sm:$0xf]
    %v643 = vld [vmem:[%s4] sm:$0x1]
    %v645 = vlaneseq
    %v646 = vshrl.u32 %v645, 7
    %v647 = vsub.s32 0, %v646
    %v648 = vrot.slane %v643, %v647
    %v714 = vunpack.c.l.b16 %v579
    %v715 = vunpack.c.l.b16 %v580
    %v716 = vunpack.c.l.b16 %v581
    %v717 = vunpack.c.l.b16 %v582
    %v718 = vunpack.c.l.b16 %v583
    %v719 = vunpack.c.l.b16 %v584
    %v720 = vunpack.c.l.b16 %v585
    %v721 = vunpack.c.l.b16 %v586
    %v722 = vunpack.c.l.b16 %v587
    %v723 = vunpack.c.l.b16 %v588
    %v724 = vunpack.c.l.b16 %v589
    %v725 = vunpack.c.l.b16 %v590
    %v726 = vunpack.c.l.b16 %v591
    %v727 = vunpack.c.l.b16 %v592
    %v728 = vunpack.c.l.b16 %v593
    %v729 = vunpack.c.l.b16 %v594
    %v730 = vunpack.c.l.b16 %v595
    %v731 = vunpack.c.l.b16 %v596
    %v732 = vunpack.c.l.b16 %v597
    %v733 = vunpack.c.l.b16 %v598
    %v734 = vunpack.c.l.b16 %v599
    %v735 = vunpack.c.l.b16 %v600
    %v736 = vunpack.c.l.b16 %v601
    %v737 = vunpack.c.l.b16 %v602
    %v738 = vunpack.c.l.b16 %v603
    %v739 = vunpack.c.l.b16 %v604
    %v740 = vunpack.c.l.b16 %v605
    %v741 = vunpack.c.l.b16 %v606
    %v742 = vunpack.c.l.b16 %v607
    %v743 = vunpack.c.l.b16 %v608
    %v744 = vunpack.c.l.b16 %v609
    %v745 = vunpack.c.l.b16 %v610
    %v746 = vunpack.c.l.b16 %v611
    %v747 = vunpack.c.l.b16 %v612
    %v748 = vunpack.c.l.b16 %v613
    %v749 = vunpack.c.l.b16 %v614
    %v750 = vunpack.c.l.b16 %v615
    %v751 = vunpack.c.l.b16 %v616
    %v752 = vunpack.c.l.b16 %v617
    %v753 = vunpack.c.l.b16 %v618
    %v754 = vunpack.c.l.b16 %v619
    %v755 = vunpack.c.l.b16 %v620
    %v756 = vunpack.c.l.b16 %v621
    %v757 = vunpack.c.l.b16 %v622
    %v758 = vunpack.c.l.b16 %v623
    %v759 = vunpack.c.l.b16 %v624
    %v760 = vunpack.c.l.b16 %v625
    %v761 = vunpack.c.l.b16 %v626
    %v762 = vunpack.c.l.b16 %v627
    %v763 = vunpack.c.l.b16 %v628
    %v764 = vunpack.c.l.b16 %v629
    %v765 = vunpack.c.l.b16 %v630
    %v766 = vunpack.c.l.b16 %v631
    %v767 = vunpack.c.l.b16 %v632
    %v768 = vunpack.c.l.b16 %v633
    %v769 = vunpack.c.l.b16 %v634
    %v770 = vunpack.c.l.b16 %v635
    %v771 = vunpack.c.l.b16 %v636
    %v772 = vunpack.c.l.b16 %v637
    %v773 = vunpack.c.l.b16 %v638
    %v774 = vunpack.c.l.b16 %v639
    %v775 = vunpack.c.l.b16 %v640
    %v776 = vunpack.c.l.b16 %v641
    %v777 = vunpack.c.l.b16 %v642
    %v778 = vpack.c.b16 %v715, %v714
    %v779 = vpack.c.b16 %v717, %v716
    %v780 = vpack.c.b16 %v719, %v718
    %v781 = vpack.c.b16 %v721, %v720
    %v782 = vpack.c.b16 %v723, %v722
    %v783 = vpack.c.b16 %v725, %v724
    %v784 = vpack.c.b16 %v727, %v726
    %v785 = vpack.c.b16 %v729, %v728
    %v786 = vpack.c.b16 %v731, %v730
    %v787 = vpack.c.b16 %v733, %v732
    %v788 = vpack.c.b16 %v735, %v734
    %v789 = vpack.c.b16 %v737, %v736
    %v790 = vpack.c.b16 %v739, %v738
    %v791 = vpack.c.b16 %v741, %v740
    %v792 = vpack.c.b16 %v743, %v742
    %v793 = vpack.c.b16 %v745, %v744
    %v794 = vpack.c.b16 %v747, %v746
    %v795 = vpack.c.b16 %v749, %v748
    %v796 = vpack.c.b16 %v751, %v750
    %v797 = vpack.c.b16 %v753, %v752
    %v798 = vpack.c.b16 %v755, %v754
    %v799 = vpack.c.b16 %v757, %v756
    %v800 = vpack.c.b16 %v759, %v758
    %v801 = vpack.c.b16 %v761, %v760
    %v802 = vpack.c.b16 %v763, %v762
    %v803 = vpack.c.b16 %v765, %v764
    %v804 = vpack.c.b16 %v767, %v766
    %v805 = vpack.c.b16 %v769, %v768
    %v806 = vpack.c.b16 %v771, %v770
    %v807 = vpack.c.b16 %v773, %v772
    %v808 = vpack.c.b16 %v775, %v774
    %v809 = vpack.c.b16 %v777, %v776
    %842 = vmatprep.subr.bf16.mxu0 0
    %843 = vmatpush1.bf16.msra.mxu0 %v778
    %844 = vmatprep.subr.bf16.mxu0 0
    %845 = vmatpush1.bf16.msra.mxu0 %v779
    %846 = vmatprep.subr.bf16.mxu0 0
    %847 = vmatpush1.bf16.msra.mxu0 %v780
    %848 = vmatprep.subr.bf16.mxu0 0
    %849 = vmatpush1.bf16.msra.mxu0 %v781
    %850 = vmatprep.subr.bf16.mxu0 0
    %851 = vmatpush1.bf16.msra.mxu0 %v782
    %852 = vmatprep.subr.bf16.mxu0 0
    %853 = vmatpush1.bf16.msra.mxu0 %v783
    %854 = vmatprep.subr.bf16.mxu0 0
    %855 = vmatpush1.bf16.msra.mxu0 %v784
    %856 = vmatprep.subr.bf16.mxu0 0
    %857 = vmatpush1.bf16.msra.mxu0 %v785
    %858 = vmatprep.subr.bf16.mxu0 0
    %859 = vmatpush1.bf16.msra.mxu0 %v786
    %860 = vmatprep.subr.bf16.mxu0 0
    %861 = vmatpush1.bf16.msra.mxu0 %v787
    %862 = vmatprep.subr.bf16.mxu0 0
    %863 = vmatpush1.bf16.msra.mxu0 %v788
    %864 = vmatprep.subr.bf16.mxu0 0
    %865 = vmatpush1.bf16.msra.mxu0 %v789
    %866 = vmatprep.subr.bf16.mxu0 0
    %867 = vmatpush1.bf16.msra.mxu0 %v790
    %868 = vmatprep.subr.bf16.mxu0 0
    %869 = vmatpush1.bf16.msra.mxu0 %v791
    %870 = vmatprep.subr.bf16.mxu0 0
    %871 = vmatpush1.bf16.msra.mxu0 %v792
    %872 = vmatprep.subr.bf16.mxu0 0
    %873 = vmatpush1.bf16.msra.mxu0 %v793
    %874 = vmatprep.mubr.bf16.mxu0 %v576
    %875 = vmatmul.mubr.bf16.gmra.mrb[0].mxu0 %v575
    %v876 = vpop.f32.mrb[0].mxu0
    %v877 = vadd.f32 %v648, %v876
    %v878 = vpop.f32.mrb[0].mxu0
    %v879 = vpop.f32.mrb[0].mxu0
    %v880 = vpop.f32.mrb[0].mxu0
    %881 = vdwg.mxu0
    %882 = vmatprep.subr.bf16.mxu0 0
    %883 = vmatpush1.bf16.msra.mxu0 %v794
    %884 = vmatprep.subr.bf16.mxu0 0
    %885 = vmatpush1.bf16.msra.mxu0 %v795
    %886 = vmatprep.subr.bf16.mxu0 0
    %887 = vmatpush1.bf16.msra.mxu0 %v796
    %888 = vmatprep.subr.bf16.mxu0 0
    %889 = vmatpush1.bf16.msra.mxu0 %v797
    %890 = vmatprep.subr.bf16.mxu0 0
    %891 = vmatpush1.bf16.msra.mxu0 %v798
    %892 = vmatprep.subr.bf16.mxu0 0
    %893 = vmatpush1.bf16.msra.mxu0 %v799
    %894 = vmatprep.subr.bf16.mxu0 0
    %895 = vmatpush1.bf16.msra.mxu0 %v800
    %896 = vmatprep.subr.bf16.mxu0 0
    %897 = vmatpush1.bf16.msra.mxu0 %v801
    %898 = vmatprep.subr.bf16.mxu0 0
    %899 = vmatpush1.bf16.msra.mxu0 %v802
    %900 = vmatprep.subr.bf16.mxu0 0
    %901 = vmatpush1.bf16.msra.mxu0 %v803
    %902 = vmatprep.subr.bf16.mxu0 0
    %903 = vmatpush1.bf16.msra.mxu0 %v804
    %904 = vmatprep.subr.bf16.mxu0 0
    %905 = vmatpush1.bf16.msra.mxu0 %v805
    %906 = vmatprep.subr.bf16.mxu0 0
    %907 = vmatpush1.bf16.msra.mxu0 %v806
    %908 = vmatprep.subr.bf16.mxu0 0
    %909 = vmatpush1.bf16.msra.mxu0 %v807
    %910 = vmatprep.subr.bf16.mxu0 0
    %911 = vmatpush1.bf16.msra.mxu0 %v808
    %912 = vmatprep.subr.bf16.mxu0 0
    %913 = vmatpush1.bf16.msra.mxu0 %v809
    %914 = vmatprep.mubr.bf16.mxu0 %v578
    %915 = vmatmul.mubr.bf16.gmra.mrb[0].mxu0 %v577
    %v916 = vpop.f32.mrb[0].mxu0
    %v917 = vadd.f32 %v877, %v916
    %v918 = vpop.f32.mrb[0].mxu0
    %v919 = vpop.f32.mrb[0].mxu0
    %v920 = vpop.f32.mrb[0].mxu0
    %921 = vdwg.mxu0
    %vm922 = vcmp.gt.f32.partialorder %v917, 0.0
    %v923 = vmin.f32 %v917, 0.0
    %v924 = vmul.f32 %v923, 1.442695
    %v925 = vpow.pop %v924
    %v926 = vsub.f32 %v925, 1.0
    %v927 = vsel %vm922, %v917, %v926
    %v928 = vpack.c.bf16 %v927, %v927
    %v929 = vld [vmem:[%s5] sm:$0xf]
    %v930 = vld [vmem:[%s5 + $0x4] sm:$0xf]
    %v931 = vld [vmem:[%s5 + $0x8] sm:$0xf]
    %v932 = vld [vmem:[%s5 + $0xc] sm:$0xf]
    %v933 = vld [vmem:[%s5 + $0x10] sm:$0xf]
    %v934 = vld [vmem:[%s5 + $0x14] sm:$0xf]
    %v935 = vld [vmem:[%s5 + $0x18] sm:$0xf]
    %v936 = vld [vmem:[%s5 + $0x1c] sm:$0xf]
    %v937 = vld [vmem:[%s5 + $0x20] sm:$0xf]
    %v938 = vld [vmem:[%s5 + $0x24] sm:$0xf]
    %v939 = vld [vmem:[%s5 + $0x28] sm:$0xf]
    %v940 = vld [vmem:[%s5 + $0x2c] sm:$0xf]
    %v941 = vld [vmem:[%s5 + $0x30] sm:$0xf]
    %v942 = vld [vmem:[%s5 + $0x34] sm:$0xf]
    %v943 = vld [vmem:[%s5 + $0x38] sm:$0xf]
    %v944 = vld [vmem:[%s5 + $0x3c] sm:$0xf]
    %v945 = vld [vmem:[%s6] sm:$0x1]
    %v947 = vlaneseq
    %v948 = vshrl.u32 %v947, 7
    %v949 = vsub.s32 0, %v948
    %v950 = vrot.slane %v945, %v949
    %v968 = vunpack.c.l.b16 %v929
    %v969 = vunpack.c.l.b16 %v930
    %v970 = vunpack.c.l.b16 %v931
    %v971 = vunpack.c.l.b16 %v932
    %v972 = vunpack.c.l.b16 %v933
    %v973 = vunpack.c.l.b16 %v934
    %v974 = vunpack.c.l.b16 %v935
    %v975 = vunpack.c.l.b16 %v936
    %v976 = vunpack.c.l.b16 %v937
    %v977 = vunpack.c.l.b16 %v938
    %v978 = vunpack.c.l.b16 %v939
    %v979 = vunpack.c.l.b16 %v940
    %v980 = vunpack.c.l.b16 %v941
    %v981 = vunpack.c.l.b16 %v942
    %v982 = vunpack.c.l.b16 %v943
    %v983 = vunpack.c.l.b16 %v944
    %v984 = vpack.c.b16 %v969, %v968
    %v985 = vpack.c.b16 %v971, %v970
    %v986 = vpack.c.b16 %v973, %v972
    %v987 = vpack.c.b16 %v975, %v974
    %v988 = vpack.c.b16 %v977, %v976
    %v989 = vpack.c.b16 %v979, %v978
    %v990 = vpack.c.b16 %v981, %v980
    %v991 = vpack.c.b16 %v983, %v982
    %1000 = vmatprep.subr.bf16.mxu0 0
    %1001 = vmatpush1.bf16.msra.mxu0 %v984
    %1002 = vmatprep.subr.bf16.mxu0 0
    %1003 = vmatpush1.bf16.msra.mxu0 %v985
    %1004 = vmatprep.subr.bf16.mxu0 0
    %1005 = vmatpush1.bf16.msra.mxu0 %v986
    %1006 = vmatprep.subr.bf16.mxu0 0
    %1007 = vmatpush1.bf16.msra.mxu0 %v987
    %1008 = vmatprep.subr.bf16.mxu0 0
    %1009 = vmatpush1.bf16.msra.mxu0 %v988
    %1010 = vmatprep.subr.bf16.mxu0 0
    %1011 = vmatpush1.bf16.msra.mxu0 %v989
    %1012 = vmatprep.subr.bf16.mxu0 0
    %1013 = vmatpush1.bf16.msra.mxu0 %v990
    %1014 = vmatprep.subr.bf16.mxu0 0
    %1015 = vmatpush1.bf16.msra.mxu0 %v991
    %1016 = vmatprep.subr.bf16.mxu0 0
    %1017 = vmatpush1.bf16.msra.mxu0 0
    %1018 = vmatprep.subr.bf16.mxu0 0
    %1019 = vmatpush1.bf16.msra.mxu0 0
    %1020 = vmatprep.subr.bf16.mxu0 0
    %1021 = vmatpush1.bf16.msra.mxu0 0
    %1022 = vmatprep.subr.bf16.mxu0 0
    %1023 = vmatpush1.bf16.msra.mxu0 0
    %1024 = vmatprep.subr.bf16.mxu0 0
    %1025 = vmatpush1.bf16.msra.mxu0 0
    %1026 = vmatprep.subr.bf16.mxu0 0
    %1027 = vmatpush1.bf16.msra.mxu0 0
    %1028 = vmatprep.subr.bf16.mxu0 0
    %1029 = vmatpush1.bf16.msra.mxu0 0
    %1030 = vmatprep.subr.bf16.mxu0 0
    %1031 = vmatpush1.bf16.msra.mxu0 0
    %1032 = vmatprep.mubr.bf16.mxu0 0
    %1033 = vmatmul.mubr.bf16.gmra.mrb[0].mxu0 %v928
    %v1034 = vpop.f32.mrb[0].mxu0
    %v1035 = vadd.f32 %v950, %v1034
    %v1036 = vpop.f32.mrb[0].mxu0
    %v1037 = vpop.f32.mrb[0].mxu0
    %v1038 = vpop.f32.mrb[0].mxu0
    %1039 = vdwg.mxu0
    %vm1040 = vcmask 23552
    %v1041 = vsel %vm1040, %v1035, -inf
    %1042 = vmax.xlane.f32.xlu0 %v1041
    %v1043 = vpop.xlane.xlu0 %1042
    %v1044 = vsub.f32 %v1035, %v1043
    %v1045 = vmul.f32 %v1044, 1.442695
    %v1046 = vpow.pop %v1045
    %v1047 = vsel %vm1040, %v1046, 0.0
    %1048 = vadd.xlane.f32.xlu0 %v1047
    %v1049 = vpop.xlane.xlu0 %1048
    %v1050 = vrcp.pop %v1049
    %v1051 = vmul.f32 %v1046, %v1050
    %1052 = vst.msk [vmem:[%s7] sm:$0xff] %vm1040, %v1051
    // Predicated region
    $region38: #{tpu_custom_call.1} parent=1 // pred_check
      _
    $region39: #{tpu_custom_call.1} parent=1 // pred_check_branch
      %1054 = sbr.rel (0) target = $region41
    $region40: #{tpu_custom_call.1} parent=1 // pred_region
      _
    $region41: #{tpu_custom_call.1} parent=1 // pred_fallthru
      _
    // Predicated region
    $region42: #{tpu_custom_call.1} parent=1 // pred_check
      _
    $region43: #{tpu_custom_call.1} parent=1 // pred_check_branch
      %1056 = sbr.rel (0) target = $region45
    $region44: #{tpu_custom_call.1} parent=1 // pred_region
      _
    $region45: #{tpu_custom_call.1} parent=1 // pred_fallthru
      _
    %1057 = vsyncpa [#allocation3], 1
    %1058 = vsyncpa [#allocation5], 1

// kernel: tpu_custom_call.1
$region0: #{tpu_custom_call.1}
  #allocation0 [shape = 'u32[]', space=smem, size = 0x4, offset = 0x4, fixed_abs, tag = 'smem constant byte address 0x4 - core index']
  #allocation1 [shape = 'u32[144,128]{1,0:T(1,128)}', space=vmem, size = 0x12000, scoped, tag = 'internal scratch']
  %s0 = inlined_call_operand.vmem [shape: bf16[8,256], index: 0, kind: input, shape index: {}]
  %s1 = inlined_call_operand.hbm [shape: bf16[256,512], index: 1, kind: input, shape index: {}]
  %s2 = inlined_call_operand.vmem [shape: f32[1,512], index: 2, kind: input, shape index: {}]
  %s3 = inlined_call_operand.hbm [shape: bf16[512,128], index: 3, kind: input, shape index: {}]
  %s4 = inlined_call_operand.vmem [shape: f32[1,128], index: 4, kind: input, shape index: {}]
  %s5 = inlined_call_operand.vmem [shape: bf16[128,3], index: 5, kind: input, shape index: {}]
  %s6 = inlined_call_operand.vmem [shape: f32[1,3], index: 6, kind: input, shape index: {}]
  %s7 = inlined_call_operand.vmem [shape: f32[8,3], index: 7, kind: output, shape index: {}]
  %s8 = sld [smem:[#allocation0]]
  $region46: #{tpu_custom_call.1} parent=0
    _
  %s10 = ssub.s32 1, %s8
  %s11 = scalar_select 0, %s10, %s8
  $region1: #{tpu_custom_call.1} parent=0
    #allocation2 [shape = 'u8[262144]{0}', space=vmem, size = 0x40000, scoped, tag = 'input window, operand 1, single buffered']
    #allocation3 [shape = 's32[1]{0}', space=sflag, size = 0x4, scoped, tag = 'scoped memory for tpu_custom_call.1']
    #allocation4 [shape = 'u8[131072]{0}', space=vmem, size = 0x20000, scoped, tag = 'input window, operand 3, single buffered']
    #allocation5 [shape = 's32[1]{0}', space=sflag, size = 0x4, scoped, tag = 'scoped memory for tpu_custom_call.1']
    %12 = vsyncpa [#allocation3], 0
    %13 = vsyncpa [#allocation5], 0
    // Predicated region
    $region2: #{tpu_custom_call.1} parent=1 // pred_check
      _
    $region3: #{tpu_custom_call.1} parent=1 // pred_check_branch
      %15 = sbr.rel (0) target = $region5
    $region4: #{tpu_custom_call.1} parent=1 // pred_region
      _
    $region5: #{tpu_custom_call.1} parent=1 // pred_fallthru
      _
    // Predicated region
    $region6: #{tpu_custom_call.1} parent=1 // pred_check
      _
    $region7: #{tpu_custom_call.1} parent=1 // pred_check_branch
      %17 = sbr.rel (0) target = $region9
    $region8: #{tpu_custom_call.1} parent=1 // pred_region
      %s19 = ssub.s32 8192, 8192
      %20 = vsyncadd [#allocation3], %s19
      %s21 = sshll.u32 [#allocation2], 4
      %s22 = int_to_ptr.vmem [resolvable:$true] %s21
      %27 = dma.hbm_to_vmem [thread:$0]  %s1, 8192, %s22, [#allocation3], 256, 256, 16
    $region9: #{tpu_custom_call.1} parent=1 // pred_fallthru
      _
    // Predicated region
    $region10: #{tpu_custom_call.1} parent=1 // pred_check
      _
    $region11: #{tpu_custom_call.1} parent=1 // pred_check_branch
      %29 = sbr.rel (0) target = $region13
    $region12: #{tpu_custom_call.1} parent=1 // pred_region
      _
    $region13: #{tpu_custom_call.1} parent=1 // pred_fallthru
      _
    // Predicated region
    $region14: #{tpu_custom_call.1} parent=1 // pred_check
      _
    $region15: #{tpu_custom_call.1} parent=1 // pred_check_branch
      %31 = sbr.rel (0) target = $region17
    $region16: #{tpu_custom_call.1} parent=1 // pred_region
      %s33 = ssub.s32 4096, 4096
      %34 = vsyncadd [#allocation5], %s33
      %s35 = sshll.u32 [#allocation4], 4
      %s36 = int_to_ptr.vmem [resolvable:$true] %s35
      %41 = dma.hbm_to_vmem [thread:$0]  %s3, 4096, %s36, [#allocation5], 64, 64, 4
    $region17: #{tpu_custom_call.1} parent=1 // pred_fallthru
      _
    // Predicated region
    $region18: #{tpu_custom_call.1} parent=1 // pred_check
      _
    $region19: #{tpu_custom_call.1} parent=1 // pred_check_branch
      %43 = sbr.rel (0) target = $region21
    $region20: #{tpu_custom_call.1} parent=1 // pred_region
      _
    $region21: #{tpu_custom_call.1} parent=1 // pred_fallthru
      _
    // Predicated region
    $region22: #{tpu_custom_call.1} parent=1 // pred_check
      _
    $region23: #{tpu_custom_call.1} parent=1 // pred_check_branch
      %45 = sbr.rel (0) target = $region25
    $region24: #{tpu_custom_call.1} parent=1 // pred_region
      _
    $region25: #{tpu_custom_call.1} parent=1 // pred_fallthru
      _
    // Predicated region
    $region26: #{tpu_custom_call.1} parent=1 // pred_check
      _
    $region27: #{tpu_custom_call.1} parent=1 // pred_check_branch
      %47 = sbr.rel (0) target = $region29
    $region28: #{tpu_custom_call.1} parent=1 // pred_region
      _
    $region29: #{tpu_custom_call.1} parent=1 // pred_fallthru
      _
    // Predicated region
    $region30: #{tpu_custom_call.1} parent=1 // pred_check
      _
    $region31: #{tpu_custom_call.1} parent=1 // pred_check_branch
      %49 = sbr.rel (0) target = $region33
    $region32: #{tpu_custom_call.1} parent=1 // pred_region
      %50 = dma.done [#allocation3], 8192
    $region33: #{tpu_custom_call.1} parent=1 // pred_fallthru
      _
    // Predicated region
    $region34: #{tpu_custom_call.1} parent=1 // pred_check
      _
    $region35: #{tpu_custom_call.1} parent=1 // pred_check_branch
      %52 = sbr.rel (0) target = $region37
    $region36: #{tpu_custom_call.1} parent=1 // pred_region
      %53 = dma.done [#allocation5], 4096
    $region37: #{tpu_custom_call.1} parent=1 // pred_fallthru
      _
    %v55 = vld [vmem:[%s0] sm:$0xff]
    %v56 = vld [vmem:[#allocation2] sm:$0xff]
    %v57 = vld [vmem:[#allocation2 + $0x8] sm:$0xff]
    %v58 = vld [vmem:[#allocation2 + $0x10] sm:$0xff]
    %v59 = vld [vmem:[#allocation2 + $0x18] sm:$0xff]
    %v60 = vld [vmem:[#allocation2 + $0x20] sm:$0xff]
    %v61 = vld [vmem:[#allocation2 + $0x28] sm:$0xff]
    %v62 = vld [vmem:[#allocation2 + $0x30] sm:$0xff]
    %v63 = vld [vmem:[#allocation2 + $0x38] sm:$0xff]
    %v64 = vld [vmem:[#allocation2 + $0x40] sm:$0xff]
    %v65 = vld [vmem:[#allocation2 + $0x48] sm:$0xff]
    %v66 = vld [vmem:[#allocation2 + $0x50] sm:$0xff]
    %v67 = vld [vmem:[#allocation2 + $0x58] sm:$0xff]
    %v68 = vld [vmem:[#allocation2 + $0x60] sm:$0xff]
    %v69 = vld [vmem:[#allocation2 + $0x68] sm:$0xff]
    %v70 = vld [vmem:[#allocation2 + $0x70] sm:$0xff]
    %v71 = vld [vmem:[#allocation2 + $0x78] sm:$0xff]
    %v72 = vld [vmem:[#allocation2 + $0x80] sm:$0xff]
    %v73 = vld [vmem:[#allocation2 + $0x88] sm:$0xff]
    %v74 = vld [vmem:[#allocation2 + $0x90] sm:$0xff]
    %v75 = vld [vmem:[#allocation2 + $0x98] sm:$0xff]
    %v76 = vld [vmem:[#allocation2 + $0xa0] sm:$0xff]
    %v77 = vld [vmem:[#allocation2 + $0xa8] sm:$0xff]
    %v78 = vld [vmem:[#allocation2 + $0xb0] sm:$0xff]
    %v79 = vld [vmem:[#allocation2 + $0xb8] sm:$0xff]
    %v80 = vld [vmem:[#allocation2 + $0xc0] sm:$0xff]
    %v81 = vld [vmem:[#allocation2 + $0xc8] sm:$0xff]
    %v82 = vld [vmem:[#allocation2 + $0xd0] sm:$0xff]
    %v83 = vld [vmem:[#allocation2 + $0xd8] sm:$0xff]
    %v84 = vld [vmem:[#allocation2 + $0xe0] sm:$0xff]
    %v85 = vld [vmem:[#allocation2 + $0xe8] sm:$0xff]
    %v86 = vld [vmem:[#allocation2 + $0xf0] sm:$0xff]
    %v87 = vld [vmem:[#allocation2 + $0xf8] sm:$0xff]
    %v88 = vld [vmem:[#allocation2 + $0x100] sm:$0xff]
    %v89 = vld [vmem:[#allocation2 + $0x108] sm:$0xff]
    %v90 = vld [vmem:[#allocation2 + $0x110] sm:$0xff]
    %v91 = vld [vmem:[#allocation2 + $0x118] sm:$0xff]
    %v92 = vld [vmem:[#allocation2 + $0x120] sm:$0xff]
    %v93 = vld [vmem:[#allocation2 + $0x128] sm:$0xff]
    %v94 = vld [vmem:[#allocation2 + $0x130] sm:$0xff]
    %v95 = vld [vmem:[#allocation2 + $0x138] sm:$0xff]
    %v96 = vld [vmem:[#allocation2 + $0x140] sm:$0xff]
    %v97 = vld [vmem:[#allocation2 + $0x148] sm:$0xff]
    %v98 = vld [vmem:[#allocation2 + $0x150] sm:$0xff]
    %v99 = vld [vmem:[#allocation2 + $0x158] sm:$0xff]
    %v100 = vld [vmem:[#allocation2 + $0x160] sm:$0xff]
    %v101 = vld [vmem:[#allocation2 + $0x168] sm:$0xff]
    %v102 = vld [vmem:[#allocation2 + $0x170] sm:$0xff]
    %v103 = vld [vmem:[#allocation2 + $0x178] sm:$0xff]
    %v104 = vld [vmem:[#allocation2 + $0x180] sm:$0xff]
    %v105 = vld [vmem:[#allocation2 + $0x188] sm:$0xff]
    %v106 = vld [vmem:[#allocation2 + $0x190] sm:$0xff]
    %v107 = vld [vmem:[#allocation2 + $0x198] sm:$0xff]
    %v108 = vld [vmem:[#allocation2 + $0x1a0] sm:$0xff]
    %v109 = vld [vmem:[#allocation2 + $0x1a8] sm:$0xff]
    %v110 = vld [vmem:[#allocation2 + $0x1b0] sm:$0xff]
    %v111 = vld [vmem:[#allocation2 + $0x1b8] sm:$0xff]
    %v112 = vld [vmem:[#allocation2 + $0x1c0] sm:$0xff]
    %v113 = vld [vmem:[#allocation2 + $0x1c8] sm:$0xff]
    %v114 = vld [vmem:[#allocation2 + $0x1d0] sm:$0xff]
    %v115 = vld [vmem:[#allocation2 + $0x1d8] sm:$0xff]
    %v116 = vld [vmem:[#allocation2 + $0x1e0] sm:$0xff]
    %v117 = vld [vmem:[#allocation2 + $0x1e8] sm:$0xff]
    %v118 = vld [vmem:[#allocation2 + $0x1f0] sm:$0xff]
    %v119 = vld [vmem:[#allocation2 + $0x1f8] sm:$0xff]
    %v120 = vld [vmem:[%s2] sm:$0xf]
    %v122 = vlaneseq
    %v123 = vshrl.u32 %v122, 7
    %v124 = vsub.s32 0, %v123
    %v125 = vrot.slane %v120, %v124
    %v126 = vlaneseq
    %v127 = vshrl.u32 %v126, 7
    %v128 = vsub.s32 1, %v127
    %v129 = vrot.slane %v120, %v128
    %v130 = vlaneseq
    %v131 = vshrl.u32 %v130, 7
    %v132 = vsub.s32 2, %v131
    %v133 = vrot.slane %v120, %v132
    %v134 = vlaneseq
    %v135 = vshrl.u32 %v134, 7
    %v136 = vsub.s32 3, %v135
    %v137 = vrot.slane %v120, %v136
    %v143 = vunpack.c.l.b16 %v55
    %v144 = vunpack.c.h.b16 %v55
    %v145 = vpack.c.b16 %v143, %v143
    %v146 = vpack.c.b16 %v144, %v144
    %v213 = vunpack.c.l.b16 %v56
    %v214 = vunpack.c.h.b16 %v56
    %v215 = vunpack.c.l.b16 %v57
    %v216 = vunpack.c.h.b16 %v57
    %v217 = vunpack.c.l.b16 %v58
    %v218 = vunpack.c.h.b16 %v58
    %v219 = vunpack.c.l.b16 %v59
    %v220 = vunpack.c.h.b16 %v59
    %v221 = vunpack.c.l.b16 %v60
    %v222 = vunpack.c.h.b16 %v60
    %v223 = vunpack.c.l.b16 %v61
    %v224 = vunpack.c.h.b16 %v61
    %v225 = vunpack.c.l.b16 %v62
    %v226 = vunpack.c.h.b16 %v62
    %v227 = vunpack.c.l.b16 %v63
    %v228 = vunpack.c.h.b16 %v63
    %v229 = vunpack.c.l.b16 %v64
    %v230 = vunpack.c.h.b16 %v64
    %v231 = vunpack.c.l.b16 %v65
    %v232 = vunpack.c.h.b16 %v65
    %v233 = vunpack.c.l.b16 %v66
    %v234 = vunpack.c.h.b16 %v66
    %v235 = vunpack.c.l.b16 %v67
    %v236 = vunpack.c.h.b16 %v67
    %v237 = vunpack.c.l.b16 %v68
    %v238 = vunpack.c.h.b16 %v68
    %v239 = vunpack.c.l.b16 %v69
    %v240 = vunpack.c.h.b16 %v69
    %v241 = vunpack.c.l.b16 %v70
    %v242 = vunpack.c.h.b16 %v70
    %v243 = vunpack.c.l.b16 %v71
    %v244 = vunpack.c.h.b16 %v71
    %v245 = vunpack.c.l.b16 %v72
    %v246 = vunpack.c.h.b16 %v72
    %v247 = vunpack.c.l.b16 %v73
    %v248 = vunpack.c.h.b16 %v73
    %v249 = vunpack.c.l.b16 %v74
    %v250 = vunpack.c.h.b16 %v74
    %v251 = vunpack.c.l.b16 %v75
    %v252 = vunpack.c.h.b16 %v75
    %v253 = vunpack.c.l.b16 %v76
    %v254 = vunpack.c.h.b16 %v76
    %v255 = vunpack.c.l.b16 %v77
    %v256 = vunpack.c.h.b16 %v77
    %v257 = vunpack.c.l.b16 %v78
    %v258 = vunpack.c.h.b16 %v78
    %v259 = vunpack.c.l.b16 %v79
    %v260 = vunpack.c.h.b16 %v79
    %v261 = vunpack.c.l.b16 %v80
    %v262 = vunpack.c.h.b16 %v80
    %v263 = vunpack.c.l.b16 %v81
    %v264 = vunpack.c.h.b16 %v81
    %v265 = vunpack.c.l.b16 %v82
    %v266 = vunpack.c.h.b16 %v82
    %v267 = vunpack.c.l.b16 %v83
    %v268 = vunpack.c.h.b16 %v83
    %v269 = vunpack.c.l.b16 %v84
    %v270 = vunpack.c.h.b16 %v84
    %v271 = vunpack.c.l.b16 %v85
    %v272 = vunpack.c.h.b16 %v85
    %v273 = vunpack.c.l.b16 %v86
    %v274 = vunpack.c.h.b16 %v86
    %v275 = vunpack.c.l.b16 %v87
    %v276 = vunpack.c.h.b16 %v87
    %v277 = vunpack.c.l.b16 %v88
    %v278 = vunpack.c.h.b16 %v88
    %v279 = vunpack.c.l.b16 %v89
    %v280 = vunpack.c.h.b16 %v89
    %v281 = vunpack.c.l.b16 %v90
    %v282 = vunpack.c.h.b16 %v90
    %v283 = vunpack.c.l.b16 %v91
    %v284 = vunpack.c.h.b16 %v91
    %v285 = vunpack.c.l.b16 %v92
    %v286 = vunpack.c.h.b16 %v92
    %v287 = vunpack.c.l.b16 %v93
    %v288 = vunpack.c.h.b16 %v93
    %v289 = vunpack.c.l.b16 %v94
    %v290 = vunpack.c.h.b16 %v94
    %v291 = vunpack.c.l.b16 %v95
    %v292 = vunpack.c.h.b16 %v95
    %v293 = vunpack.c.l.b16 %v96
    %v294 = vunpack.c.h.b16 %v96
    %v295 = vunpack.c.l.b16 %v97
    %v296 = vunpack.c.h.b16 %v97
    %v297 = vunpack.c.l.b16 %v98
    %v298 = vunpack.c.h.b16 %v98
    %v299 = vunpack.c.l.b16 %v99
    %v300 = vunpack.c.h.b16 %v99
    %v301 = vunpack.c.l.b16 %v100
    %v302 = vunpack.c.h.b16 %v100
    %v303 = vunpack.c.l.b16 %v101
    %v304 = vunpack.c.h.b16 %v101
    %v305 = vunpack.c.l.b16 %v102
    %v306 = vunpack.c.h.b16 %v102
    %v307 = vunpack.c.l.b16 %v103
    %v308 = vunpack.c.h.b16 %v103
    %v309 = vunpack.c.l.b16 %v104
    %v310 = vunpack.c.h.b16 %v104
    %v311 = vunpack.c.l.b16 %v105
    %v312 = vunpack.c.h.b16 %v105
    %v313 = vunpack.c.l.b16 %v106
    %v314 = vunpack.c.h.b16 %v106
    %v315 = vunpack.c.l.b16 %v107
    %v316 = vunpack.c.h.b16 %v107
    %v317 = vunpack.c.l.b16 %v108
    %v318 = vunpack.c.h.b16 %v108
    %v319 = vunpack.c.l.b16 %v109
    %v320 = vunpack.c.h.b16 %v109
    %v321 = vunpack.c.l.b16 %v110
    %v322 = vunpack.c.h.b16 %v110
    %v323 = vunpack.c.l.b16 %v111
    %v324 = vunpack.c.h.b16 %v111
    %v325 = vunpack.c.l.b16 %v112
    %v326 = vunpack.c.h.b16 %v112
    %v327 = vunpack.c.l.b16 %v113
    %v328 = vunpack.c.h.b16 %v113
    %v329 = vunpack.c.l.b16 %v114
    %v330 = vunpack.c.h.b16 %v114
    %v331 = vunpack.c.l.b16 %v115
    %v332 = vunpack.c.h.b16 %v115
    %v333 = vunpack.c.l.b16 %v116
    %v334 = vunpack.c.h.b16 %v116
    %v335 = vunpack.c.l.b16 %v117
    %v336 = vunpack.c.h.b16 %v117
    %v337 = vunpack.c.l.b16 %v118
    %v338 = vunpack.c.h.b16 %v118
    %v339 = vunpack.c.l.b16 %v119
    %v340 = vunpack.c.h.b16 %v119
    %v341 = vpack.c.b16 %v217, %v213
    %v342 = vpack.c.b16 %v218, %v214
    %v343 = vpack.c.b16 %v219, %v215
    %v344 = vpack.c.b16 %v220, %v216
    %v345 = vpack.c.b16 %v225, %v221
    %v346 = vpack.c.b16 %v226, %v222
    %v347 = vpack.c.b16 %v227, %v223
    %v348 = vpack.c.b16 %v228, %v224
    %v349 = vpack.c.b16 %v233, %v229
    %v350 = vpack.c.b16 %v234, %v230
    %v351 = vpack.c.b16 %v235, %v231
    %v352 = vpack.c.b16 %v236, %v232
    %v353 = vpack.c.b16 %v241, %v237
    %v354 = vpack.c.b16 %v242, %v238
    %v355 = vpack.c.b16 %v243, %v239
    %v356 = vpack.c.b16 %v244, %v240
    %v357 = vpack.c.b16 %v249, %v245
    %v358 = vpack.c.b16 %v250, %v246
    %v359 = vpack.c.b16 %v251, %v247
    %v360 = vpack.c.b16 %v252, %v248
    %v361 = vpack.c.b16 %v257, %v253
    %v362 = vpack.c.b16 %v258, %v254
    %v363 = vpack.c.b16 %v259, %v255
    %v364 = vpack.c.b16 %v260, %v256
    %v365 = vpack.c.b16 %v265, %v261
    %v366 = vpack.c.b16 %v266, %v262
    %v367 = vpack.c.b16 %v267, %v263
    %v368 = vpack.c.b16 %v268, %v264
    %v369 = vpack.c.b16 %v273, %v269
    %v370 = vpack.c.b16 %v274, %v270
    %v371 = vpack.c.b16 %v275, %v271
    %v372 = vpack.c.b16 %v276, %v272
    %v373 = vpack.c.b16 %v281, %v277
    %v374 = vpack.c.b16 %v282, %v278
    %v375 = vpack.c.b16 %v283, %v279
    %v376 = vpack.c.b16 %v284, %v280
    %v377 = vpack.c.b16 %v289, %v285
    %v378 = vpack.c.b16 %v290, %v286
    %v379 = vpack.c.b16 %v291, %v287
    %v380 = vpack.c.b16 %v292, %v288
    %v381 = vpack.c.b16 %v297, %v293
    %v382 = vpack.c.b16 %v298, %v294
    %v383 = vpack.c.b16 %v299, %v295
    %v384 = vpack.c.b16 %v300, %v296
    %v385 = vpack.c.b16 %v305, %v301
    %v386 = vpack.c.b16 %v306, %v302
    %v387 = vpack.c.b16 %v307, %v303
    %v388 = vpack.c.b16 %v308, %v304
    %v389 = vpack.c.b16 %v313, %v309
    %v390 = vpack.c.b16 %v314, %v310
    %v391 = vpack.c.b16 %v315, %v311
    %v392 = vpack.c.b16 %v316, %v312
    %v393 = vpack.c.b16 %v321, %v317
    %v394 = vpack.c.b16 %v322, %v318
    %v395 = vpack.c.b16 %v323, %v319
    %v396 = vpack.c.b16 %v324, %v320
    %v397 = vpack.c.b16 %v329, %v325
    %v398 = vpack.c.b16 %v330, %v326
    %v399 = vpack.c.b16 %v331, %v327
    %v400 = vpack.c.b16 %v332, %v328
    %v401 = vpack.c.b16 %v337, %v333
    %v402 = vpack.c.b16 %v338, %v334
    %v403 = vpack.c.b16 %v339, %v335
    %v404 = vpack.c.b16 %v340, %v336
    %469 = vmatprep.subr.bf16.mxu0 %v342
    %470 = vmatpush1.bf16.msra.mxu0 %v341
    %471 = vmatprep.subr.bf16.mxu0 %v346
    %472 = vmatpush1.bf16.msra.mxu0 %v345
    %473 = vmatprep.subr.bf16.mxu0 %v350
    %474 = vmatpush1.bf16.msra.mxu0 %v349
    %475 = vmatprep.subr.bf16.mxu0 %v354
    %476 = vmatpush1.bf16.msra.mxu0 %v353
    %477 = vmatprep.subr.bf16.mxu0 %v358
    %478 = vmatpush1.bf16.msra.mxu0 %v357
    %479 = vmatprep.subr.bf16.mxu0 %v362
    %480 = vmatpush1.bf16.msra.mxu0 %v361
    %481 = vmatprep.subr.bf16.mxu0 %v366
    %482 = vmatpush1.bf16.msra.mxu0 %v365
    %483 = vmatprep.subr.bf16.mxu0 %v370
    %484 = vmatpush1.bf16.msra.mxu0 %v369
    %485 = vmatprep.subr.bf16.mxu0 %v374
    %486 = vmatpush1.bf16.msra.mxu0 %v373
    %487 = vmatprep.subr.bf16.mxu0 %v378
    %488 = vmatpush1.bf16.msra.mxu0 %v377
    %489 = vmatprep.subr.bf16.mxu0 %v382
    %490 = vmatpush1.bf16.msra.mxu0 %v381
    %491 = vmatprep.subr.bf16.mxu0 %v386
    %492 = vmatpush1.bf16.msra.mxu0 %v385
    %493 = vmatprep.subr.bf16.mxu0 %v390
    %494 = vmatpush1.bf16.msra.mxu0 %v389
    %495 = vmatprep.subr.bf16.mxu0 %v394
    %496 = vmatpush1.bf16.msra.mxu0 %v393
    %497 = vmatprep.subr.bf16.mxu0 %v398
    %498 = vmatpush1.bf16.msra.mxu0 %v397
    %499 = vmatprep.subr.bf16.mxu0 %v402
    %500 = vmatpush1.bf16.msra.mxu0 %v401
    %501 = vmatprep.mubr.bf16.mxu0 %v146
    %502 = vmatmul.mubr.bf16.gmra.mrb[0].mxu0 %v145
    %v503 = vpop.f32.mrb[0].mxu0
    %v504 = vadd.f32 %v125, %v503
    %v505 = vpop.f32.mrb[0].mxu0
    %v506 = vadd.f32 %v129, %v505
    %v507 = vpop.f32.mrb[0].mxu0
    %v508 = vpop.f32.mrb[0].mxu0
    %509 = vdwg.mxu0
    %510 = vmatprep.subr.bf16.mxu0 %v344
    %511 = vmatpush1.bf16.msra.mxu0 %v343
    %512 = vmatprep.subr.bf16.mxu0 %v348
    %513 = vmatpush1.bf16.msra.mxu0 %v347
    %514 = vmatprep.subr.bf16.mxu0 %v352
    %515 = vmatpush1.bf16.msra.mxu0 %v351
    %516 = vmatprep.subr.bf16.mxu0 %v356
    %517 = vmatpush1.bf16.msra.mxu0 %v355
    %518 = vmatprep.subr.bf16.mxu0 %v360
    %519 = vmatpush1.bf16.msra.mxu0 %v359
    %520 = vmatprep.subr.bf16.mxu0 %v364
    %521 = vmatpush1.bf16.msra.mxu0 %v363
    %522 = vmatprep.subr.bf16.mxu0 %v368
    %523 = vmatpush1.bf16.msra.mxu0 %v367
    %524 = vmatprep.subr.bf16.mxu0 %v372
    %525 = vmatpush1.bf16.msra.mxu0 %v371
    %526 = vmatprep.subr.bf16.mxu0 %v376
    %527 = vmatpush1.bf16.msra.mxu0 %v375
    %528 = vmatprep.subr.bf16.mxu0 %v380
    %529 = vmatpush1.bf16.msra.mxu0 %v379
    %530 = vmatprep.subr.bf16.mxu0 %v384
    %531 = vmatpush1.bf16.msra.mxu0 %v383
    %532 = vmatprep.subr.bf16.mxu0 %v388
    %533 = vmatpush1.bf16.msra.mxu0 %v387
    %534 = vmatprep.subr.bf16.mxu0 %v392
    %535 = vmatpush1.bf16.msra.mxu0 %v391
    %536 = vmatprep.subr.bf16.mxu0 %v396
    %537 = vmatpush1.bf16.msra.mxu0 %v395
    %538 = vmatprep.subr.bf16.mxu0 %v400
    %539 = vmatpush1.bf16.msra.mxu0 %v399
    %540 = vmatprep.subr.bf16.mxu0 %v404
    %541 = vmatpush1.bf16.msra.mxu0 %v403
    %542 = vmatprep.mubr.bf16.mxu0 %v146
    %543 = vmatmul.mubr.bf16.gmra.mrb[0].mxu0 %v145
    %v544 = vpop.f32.mrb[0].mxu0
    %v545 = vadd.f32 %v133, %v544
    %v546 = vpop.f32.mrb[0].mxu0
    %v547 = vadd.f32 %v137, %v546
    %v548 = vpop.f32.mrb[0].mxu0
    %v549 = vpop.f32.mrb[0].mxu0
    %550 = vdwg.mxu0
    %vm551 = vcmp.gt.f32.partialorder %v504, 0.0
    %vm552 = vcmp.gt.f32.partialorder %v506, 0.0
    %vm553 = vcmp.gt.f32.partialorder %v545, 0.0
    %vm554 = vcmp.gt.f32.partialorder %v547, 0.0
    %v555 = vmin.f32 %v504, 0.0
    %v556 = vmin.f32 %v506, 0.0
    %v557 = vmin.f32 %v545, 0.0
    %v558 = vmin.f32 %v547, 0.0
    %v559 = vmul.f32 %v555, 1.442695
    %v560 = vpow.pop %v559
    %v561 = vmul.f32 %v556, 1.442695
    %v562 = vpow.pop %v561
    %v563 = vmul.f32 %v557, 1.442695
    %v564 = vpow.pop %v563
    %v565 = vmul.f32 %v558, 1.442695
    %v566 = vpow.pop %v565
    %v567 = vsub.f32 %v560, 1.0
    %v568 = vsub.f32 %v562, 1.0
    %v569 = vsub.f32 %v564, 1.0
    %v570 = vsub.f32 %v566, 1.0
    %v571 = vsel %vm551, %v504, %v567
    %v572 = vsel %vm552, %v506, %v568
    %v573 = vsel %vm553, %v545, %v569
    %v574 = vsel %vm554, %v547, %v570
    %v575 = vpack.c.bf16 %v571, %v571
    %v576 = vpack.c.bf16 %v572, %v572
    %v577 = vpack.c.bf16 %v573, %v573
    %v578 = vpack.c.bf16 %v574, %v574
    %v579 = vld [vmem:[#allocation4] sm:$0xf]
    %v580 = vld [vmem:[#allocation4 + $0x4] sm:$0xf]
    %v581 = vld [vmem:[#allocation4 + $0x8] sm:$0xf]
    %v582 = vld [vmem:[#allocation4 + $0xc] sm:$0xf]
    %v583 = vld [vmem:[#allocation4 + $0x10] sm:$0xf]
    %v584 = vld [vmem:[#allocation4 + $0x14] sm:$0xf]
    %v585 = vld [vmem:[#allocation4 + $0x18] sm:$0xf]
    %v586 = vld [vmem:[#allocation4 + $0x1c] sm:$0xf]
    %v587 = vld [vmem:[#allocation4 + $0x20] sm:$0xf]
    %v588 = vld [vmem:[#allocation4 + $0x24] sm:$0xf]
    %v589 = vld [vmem:[#allocation4 + $0x28] sm:$0xf]
    %v590 = vld [vmem:[#allocation4 + $0x2c] sm:$0xf]
    %v591 = vld [vmem:[#allocation4 + $0x30] sm:$0xf]
    %v592 = vld [vmem:[#allocation4 + $0x34] sm:$0xf]
    %v593 = vld [vmem:[#allocation4 + $0x38] sm:$0xf]
    %v594 = vld [vmem:[#allocation4 + $0x3c] sm:$0xf]
    %v595 = vld [vmem:[#allocation4 + $0x40] sm:$0xf]
    %v596 = vld [vmem:[#allocation4 + $0x44] sm:$0xf]
    %v597 = vld [vmem:[#allocation4 + $0x48] sm:$0xf]
    %v598 = vld [vmem:[#allocation4 + $0x4c] sm:$0xf]
    %v599 = vld [vmem:[#allocation4 + $0x50] sm:$0xf]
    %v600 = vld [vmem:[#allocation4 + $0x54] sm:$0xf]
    %v601 = vld [vmem:[#allocation4 + $0x58] sm:$0xf]
    %v602 = vld [vmem:[#allocation4 + $0x5c] sm:$0xf]
    %v603 = vld [vmem:[#allocation4 + $0x60] sm:$0xf]
    %v604 = vld [vmem:[#allocation4 + $0x64] sm:$0xf]
    %v605 = vld [vmem:[#allocation4 + $0x68] sm:$0xf]
    %v606 = vld [vmem:[#allocation4 + $0x6c] sm:$0xf]
    %v607 = vld [vmem:[#allocation4 + $0x70] sm:$0xf]
    %v608 = vld [vmem:[#allocation4 + $0x74] sm:$0xf]
    %v609 = vld [vmem:[#allocation4 + $0x78] sm:$0xf]
    %v610 = vld [vmem:[#allocation4 + $0x7c] sm:$0xf]
    %v611 = vld [vmem:[#allocation4 + $0x80] sm:$0xf]
    %v612 = vld [vmem:[#allocation4 + $0x84] sm:$0xf]
    %v613 = vld [vmem:[#allocation4 + $0x88] sm:$0xf]
    %v614 = vld [vmem:[#allocation4 + $0x8c] sm:$0xf]
    %v615 = vld [vmem:[#allocation4 + $0x90] sm:$0xf]
    %v616 = vld [vmem:[#allocation4 + $0x94] sm:$0xf]
    %v617 = vld [vmem:[#allocation4 + $0x98] sm:$0xf]
    %v618 = vld [vmem:[#allocation4 + $0x9c] sm:$0xf]
    %v619 = vld [vmem:[#allocation4 + $0xa0] sm:$0xf]
    %v620 = vld [vmem:[#allocation4 + $0xa4] sm:$0xf]
    %v621 = vld [vmem:[#allocation4 + $0xa8] sm:$0xf]
    %v622 = vld [vmem:[#allocation4 + $0xac] sm:$0xf]
    %v623 = vld [vmem:[#allocation4 + $0xb0] sm:$0xf]
    %v624 = vld [vmem:[#allocation4 + $0xb4] sm:$0xf]
    %v625 = vld [vmem:[#allocation4 + $0xb8] sm:$0xf]
    %v626 = vld [vmem:[#allocation4 + $0xbc] sm:$0xf]
    %v627 = vld [vmem:[#allocation4 + $0xc0] sm:$0xf]
    %v628 = vld [vmem:[#allocation4 + $0xc4] sm:$0xf]
    %v629 = vld [vmem:[#allocation4 + $0xc8] sm:$0xf]
    %v630 = vld [vmem:[#allocation4 + $0xcc] sm:$0xf]
    %v631 = vld [vmem:[#allocation4 + $0xd0] sm:$0xf]
    %v632 = vld [vmem:[#allocation4 + $0xd4] sm:$0xf]
    %v633 = vld [vmem:[#allocation4 + $0xd8] sm:$0xf]
    %v634 = vld [vmem:[#allocation4 + $0xdc] sm:$0xf]
    %v635 = vld [vmem:[#allocation4 + $0xe0] sm:$0xf]
    %v636 = vld [vmem:[#allocation4 + $0xe4] sm:$0xf]
    %v637 = vld [vmem:[#allocation4 + $0xe8] sm:$0xf]
    %v638 = vld [vmem:[#allocation4 + $0xec] sm:$0xf]
    %v639 = vld [vmem:[#allocation4 + $0xf0] sm:$0xf]
    %v640 = vld [vmem:[#allocation4 + $0xf4] sm:$0xf]
    %v641 = vld [vmem:[#allocation4 + $0xf8] sm:$0xf]
    %v642 = vld [vmem:[#allocation4 + $0xfc] sm:$0xf]
    %v643 = vld [vmem:[%s4] sm:$0x1]
    %v645 = vlaneseq
    %v646 = vshrl.u32 %v645, 7
    %v647 = vsub.s32 0, %v646
    %v648 = vrot.slane %v643, %v647
    %v714 = vunpack.c.l.b16 %v579
    %v715 = vunpack.c.l.b16 %v580
    %v716 = vunpack.c.l.b16 %v581
    %v717 = vunpack.c.l.b16 %v582
    %v718 = vunpack.c.l.b16 %v583
    %v719 = vunpack.c.l.b16 %v584
    %v720 = vunpack.c.l.b16 %v585
    %v721 = vunpack.c.l.b16 %v586
    %v722 = vunpack.c.l.b16 %v587
    %v723 = vunpack.c.l.b16 %v588
    %v724 = vunpack.c.l.b16 %v589
    %v725 = vunpack.c.l.b16 %v590
    %v726 = vunpack.c.l.b16 %v591
    %v727 = vunpack.c.l.b16 %v592
    %v728 = vunpack.c.l.b16 %v593
    %v729 = vunpack.c.l.b16 %v594
    %v730 = vunpack.c.l.b16 %v595
    %v731 = vunpack.c.l.b16 %v596
    %v732 = vunpack.c.l.b16 %v597
    %v733 = vunpack.c.l.b16 %v598
    %v734 = vunpack.c.l.b16 %v599
    %v735 = vunpack.c.l.b16 %v600
    %v736 = vunpack.c.l.b16 %v601
    %v737 = vunpack.c.l.b16 %v602
    %v738 = vunpack.c.l.b16 %v603
    %v739 = vunpack.c.l.b16 %v604
    %v740 = vunpack.c.l.b16 %v605
    %v741 = vunpack.c.l.b16 %v606
    %v742 = vunpack.c.l.b16 %v607
    %v743 = vunpack.c.l.b16 %v608
    %v744 = vunpack.c.l.b16 %v609
    %v745 = vunpack.c.l.b16 %v610
    %v746 = vunpack.c.l.b16 %v611
    %v747 = vunpack.c.l.b16 %v612
    %v748 = vunpack.c.l.b16 %v613
    %v749 = vunpack.c.l.b16 %v614
    %v750 = vunpack.c.l.b16 %v615
    %v751 = vunpack.c.l.b16 %v616
    %v752 = vunpack.c.l.b16 %v617
    %v753 = vunpack.c.l.b16 %v618
    %v754 = vunpack.c.l.b16 %v619
    %v755 = vunpack.c.l.b16 %v620
    %v756 = vunpack.c.l.b16 %v621
    %v757 = vunpack.c.l.b16 %v622
    %v758 = vunpack.c.l.b16 %v623
    %v759 = vunpack.c.l.b16 %v624
    %v760 = vunpack.c.l.b16 %v625
    %v761 = vunpack.c.l.b16 %v626
    %v762 = vunpack.c.l.b16 %v627
    %v763 = vunpack.c.l.b16 %v628
    %v764 = vunpack.c.l.b16 %v629
    %v765 = vunpack.c.l.b16 %v630
    %v766 = vunpack.c.l.b16 %v631
    %v767 = vunpack.c.l.b16 %v632
    %v768 = vunpack.c.l.b16 %v633
    %v769 = vunpack.c.l.b16 %v634
    %v770 = vunpack.c.l.b16 %v635
    %v771 = vunpack.c.l.b16 %v636
    %v772 = vunpack.c.l.b16 %v637
    %v773 = vunpack.c.l.b16 %v638
    %v774 = vunpack.c.l.b16 %v639
    %v775 = vunpack.c.l.b16 %v640
    %v776 = vunpack.c.l.b16 %v641
    %v777 = vunpack.c.l.b16 %v642
    %v778 = vpack.c.b16 %v715, %v714
    %v779 = vpack.c.b16 %v717, %v716
    %v780 = vpack.c.b16 %v719, %v718
    %v781 = vpack.c.b16 %v721, %v720
    %v782 = vpack.c.b16 %v723, %v722
    %v783 = vpack.c.b16 %v725, %v724
    %v784 = vpack.c.b16 %v727, %v726
    %v785 = vpack.c.b16 %v729, %v728
    %v786 = vpack.c.b16 %v731, %v730
    %v787 = vpack.c.b16 %v733, %v732
    %v788 = vpack.c.b16 %v735, %v734
    %v789 = vpack.c.b16 %v737, %v736
    %v790 = vpack.c.b16 %v739, %v738
    %v791 = vpack.c.b16 %v741, %v740
    %v792 = vpack.c.b16 %v743, %v742
    %v793 = vpack.c.b16 %v745, %v744
    %v794 = vpack.c.b16 %v747, %v746
    %v795 = vpack.c.b16 %v749, %v748
    %v796 = vpack.c.b16 %v751, %v750
    %v797 = vpack.c.b16 %v753, %v752
    %v798 = vpack.c.b16 %v755, %v754
    %v799 = vpack.c.b16 %v757, %v756
    %v800 = vpack.c.b16 %v759, %v758
    %v801 = vpack.c.b16 %v761, %v760
    %v802 = vpack.c.b16 %v763, %v762
    %v803 = vpack.c.b16 %v765, %v764
    %v804 = vpack.c.b16 %v767, %v766
    %v805 = vpack.c.b16 %v769, %v768
    %v806 = vpack.c.b16 %v771, %v770
    %v807 = vpack.c.b16 %v773, %v772
    %v808 = vpack.c.b16 %v775, %v774
    %v809 = vpack.c.b16 %v777, %v776
    %842 = vmatprep.subr.bf16.mxu0 0
    %843 = vmatpush1.bf16.msra.mxu0 %v778
    %844 = vmatprep.subr.bf16.mxu0 0
    %845 = vmatpush1.bf16.msra.mxu0 %v779
    %846 = vmatprep.subr.bf16.mxu0 0
    %847 = vmatpush1.bf16.msra.mxu0 %v780
    %848 = vmatprep.subr.bf16.mxu0 0
    %849 = vmatpush1.bf16.msra.mxu0 %v781
    %850 = vmatprep.subr.bf16.mxu0 0
    %851 = vmatpush1.bf16.msra.mxu0 %v782
    %852 = vmatprep.subr.bf16.mxu0 0
    %853 = vmatpush1.bf16.msra.mxu0 %v783
    %854 = vmatprep.subr.bf16.mxu0 0
    %855 = vmatpush1.bf16.msra.mxu0 %v784
    %856 = vmatprep.subr.bf16.mxu0 0
    %857 = vmatpush1.bf16.msra.mxu0 %v785
    %858 = vmatprep.subr.bf16.mxu0 0
    %859 = vmatpush1.bf16.msra.mxu0 %v786
    %860 = vmatprep.subr.bf16.mxu0 0
    %861 = vmatpush1.bf16.msra.mxu0 %v787
    %862 = vmatprep.subr.bf16.mxu0 0
    %863 = vmatpush1.bf16.msra.mxu0 %v788
    %864 = vmatprep.subr.bf16.mxu0 0
    %865 = vmatpush1.bf16.msra.mxu0 %v789
    %866 = vmatprep.subr.bf16.mxu0 0
    %867 = vmatpush1.bf16.msra.mxu0 %v790
    %868 = vmatprep.subr.bf16.mxu0 0
    %869 = vmatpush1.bf16.msra.mxu0 %v791
    %870 = vmatprep.subr.bf16.mxu0 0
    %871 = vmatpush1.bf16.msra.mxu0 %v792
    %872 = vmatprep.subr.bf16.mxu0 0
    %873 = vmatpush1.bf16.msra.mxu0 %v793
    %874 = vmatprep.mubr.bf16.mxu0 %v576
    %875 = vmatmul.mubr.bf16.gmra.mrb[0].mxu0 %v575
    %v876 = vpop.f32.mrb[0].mxu0
    %v877 = vadd.f32 %v648, %v876
    %v878 = vpop.f32.mrb[0].mxu0
    %v879 = vpop.f32.mrb[0].mxu0
    %v880 = vpop.f32.mrb[0].mxu0
    %881 = vdwg.mxu0
    %882 = vmatprep.subr.bf16.mxu0 0
    %883 = vmatpush1.bf16.msra.mxu0 %v794
    %884 = vmatprep.subr.bf16.mxu0 0
    %885 = vmatpush1.bf16.msra.mxu0 %v795
    %886 = vmatprep.subr.bf16.mxu0 0
    %887 = vmatpush1.bf16.msra.mxu0 %v796
    %888 = vmatprep.subr.bf16.mxu0 0
    %889 = vmatpush1.bf16.msra.mxu0 %v797
    %890 = vmatprep.subr.bf16.mxu0 0
    %891 = vmatpush1.bf16.msra.mxu0 %v798
    %892 = vmatprep.subr.bf16.mxu0 0
    %893 = vmatpush1.bf16.msra.mxu0 %v799
    %894 = vmatprep.subr.bf16.mxu0 0
    %895 = vmatpush1.bf16.msra.mxu0 %v800
    %896 = vmatprep.subr.bf16.mxu0 0
    %897 = vmatpush1.bf16.msra.mxu0 %v801
    %898 = vmatprep.subr.bf16.mxu0 0
    %899 = vmatpush1.bf16.msra.mxu0 %v802
    %900 = vmatprep.subr.bf16.mxu0 0
    %901 = vmatpush1.bf16.msra.mxu0 %v803
    %902 = vmatprep.subr.bf16.mxu0 0
    %903 = vmatpush1.bf16.msra.mxu0 %v804
    %904 = vmatprep.subr.bf16.mxu0 0
    %905 = vmatpush1.bf16.msra.mxu0 %v805
    %906 = vmatprep.subr.bf16.mxu0 0
    %907 = vmatpush1.bf16.msra.mxu0 %v806
    %908 = vmatprep.subr.bf16.mxu0 0
    %909 = vmatpush1.bf16.msra.mxu0 %v807
    %910 = vmatprep.subr.bf16.mxu0 0
    %911 = vmatpush1.bf16.msra.mxu0 %v808
    %912 = vmatprep.subr.bf16.mxu0 0
    %913 = vmatpush1.bf16.msra.mxu0 %v809
    %914 = vmatprep.mubr.bf16.mxu0 %v578
    %915 = vmatmul.mubr.bf16.gmra.mrb[0].mxu0 %v577
    %v916 = vpop.f32.mrb[0].mxu0
    %v917 = vadd.f32 %v877, %v916
    %v918 = vpop.f32.mrb[0].mxu0
    %v919 = vpop.f32.mrb[0].mxu0
    %v920 = vpop.f32.mrb[0].mxu0
    %921 = vdwg.mxu0
    %vm922 = vcmp.gt.f32.partialorder %v917, 0.0
    %v923 = vmin.f32 %v917, 0.0
    %v924 = vmul.f32 %v923, 1.442695
    %v925 = vpow.pop %v924
    %v926 = vsub.f32 %v925, 1.0
    %v927 = vsel %vm922, %v917, %v926
    %v928 = vpack.c.bf16 %v927, %v927
    %v929 = vld [vmem:[%s5] sm:$0xf]
    %v930 = vld [vmem:[%s5 + $0x4] sm:$0xf]
    %v931 = vld [vmem:[%s5 + $0x8] sm:$0xf]
    %v932 = vld [vmem:[%s5 + $0xc] sm:$0xf]
    %v933 = vld [vmem:[%s5 + $0x10] sm:$0xf]
    %v934 = vld [vmem:[%s5 + $0x14] sm:$0xf]
    %v935 = vld [vmem:[%s5 + $0x18] sm:$0xf]
    %v936 = vld [vmem:[%s5 + $0x1c] sm:$0xf]
    %v937 = vld [vmem:[%s5 + $0x20] sm:$0xf]
    %v938 = vld [vmem:[%s5 + $0x24] sm:$0xf]
    %v939 = vld [vmem:[%s5 + $0x28] sm:$0xf]
    %v940 = vld [vmem:[%s5 + $0x2c] sm:$0xf]
    %v941 = vld [vmem:[%s5 + $0x30] sm:$0xf]
    %v942 = vld [vmem:[%s5 + $0x34] sm:$0xf]
    %v943 = vld [vmem:[%s5 + $0x38] sm:$0xf]
    %v944 = vld [vmem:[%s5 + $0x3c] sm:$0xf]
    %v945 = vld [vmem:[%s6] sm:$0x1]
    %v947 = vlaneseq
    %v948 = vshrl.u32 %v947, 7
    %v949 = vsub.s32 0, %v948
    %v950 = vrot.slane %v945, %v949
    %v968 = vunpack.c.l.b16 %v929
    %v969 = vunpack.c.l.b16 %v930
    %v970 = vunpack.c.l.b16 %v931
    %v971 = vunpack.c.l.b16 %v932
    %v972 = vunpack.c.l.b16 %v933
    %v973 = vunpack.c.l.b16 %v934
    %v974 = vunpack.c.l.b16 %v935
    %v975 = vunpack.c.l.b16 %v936
    %v976 = vunpack.c.l.b16 %v937
    %v977 = vunpack.c.l.b16 %v938
    %v978 = vunpack.c.l.b16 %v939
    %v979 = vunpack.c.l.b16 %v940
    %v980 = vunpack.c.l.b16 %v941
    %v981 = vunpack.c.l.b16 %v942
    %v982 = vunpack.c.l.b16 %v943
    %v983 = vunpack.c.l.b16 %v944
    %v984 = vpack.c.b16 %v969, %v968
    %v985 = vpack.c.b16 %v971, %v970
    %v986 = vpack.c.b16 %v973, %v972
    %v987 = vpack.c.b16 %v975, %v974
    %v988 = vpack.c.b16 %v977, %v976
    %v989 = vpack.c.b16 %v979, %v978
    %v990 = vpack.c.b16 %v981, %v980
    %v991 = vpack.c.b16 %v983, %v982
    %1000 = vmatprep.subr.bf16.mxu0 0
    %1001 = vmatpush1.bf16.msra.mxu0 %v984
    %1002 = vmatprep.subr.bf16.mxu0 0
    %1003 = vmatpush1.bf16.msra.mxu0 %v985
    %1004 = vmatprep.subr.bf16.mxu0 0
    %1005 = vmatpush1.bf16.msra.mxu0 %v986
    %1006 = vmatprep.subr.bf16.mxu0 0
    %1007 = vmatpush1.bf16.msra.mxu0 %v987
    %1008 = vmatprep.subr.bf16.mxu0 0
    %1009 = vmatpush1.bf16.msra.mxu0 %v988
    %1010 = vmatprep.subr.bf16.mxu0 0
    %1011 = vmatpush1.bf16.msra.mxu0 %v989
    %1012 = vmatprep.subr.bf16.mxu0 0
    %1013 = vmatpush1.bf16.msra.mxu0 %v990
    %1014 = vmatprep.subr.bf16.mxu0 0
    %1015 = vmatpush1.bf16.msra.mxu0 %v991
    %1016 = vmatprep.subr.bf16.mxu0 0
    %1017 = vmatpush1.bf16.msra.mxu0 0
    %1018 = vmatprep.subr.bf16.mxu0 0
    %1019 = vmatpush1.bf16.msra.mxu0 0
    %1020 = vmatprep.subr.bf16.mxu0 0
    %1021 = vmatpush1.bf16.msra.mxu0 0
    %1022 = vmatprep.subr.bf16.mxu0 0
    %1023 = vmatpush1.bf16.msra.mxu0 0
    %1024 = vmatprep.subr.bf16.mxu0 0
    %1025 = vmatpush1.bf16.msra.mxu0 0
    %1026 = vmatprep.subr.bf16.mxu0 0
    %1027 = vmatpush1.bf16.msra.mxu0 0
    %1028 = vmatprep.subr.bf16.mxu0 0
    %1029 = vmatpush1.bf16.msra.mxu0 0
    %1030 = vmatprep.subr.bf16.mxu0 0
    %1031 = vmatpush1.bf16.msra.mxu0 0
    %1032 = vmatprep.mubr.bf16.mxu0 0
    %1033 = vmatmul.mubr.bf16.gmra.mrb[0].mxu0 %v928
    %v1034 = vpop.f32.mrb[0].mxu0
    %v1035 = vadd.f32 %v950, %v1034
    %v1036 = vpop.f32.mrb[0].mxu0
    %v1037 = vpop.f32.mrb[0].mxu0
    %v1038 = vpop.f32.mrb[0].mxu0
    %1039 = vdwg.mxu0
    %vm1040 = vcmask 23552
    %v1041 = vsel %vm1040, %v1035, -inf
    %1042 = vmax.xlane.f32.xlu0 %v1041
    %v1043 = vpop.xlane.xlu0 %1042
    %v1044 = vsub.f32 %v1035, %v1043
    %v1045 = vmul.f32 %v1044, 1.442695
    %v1046 = vpow.pop %v1045
    %v1047 = vsel %vm1040, %v1046, 0.0
    %1048 = vadd.xlane.f32.xlu0 %v1047
    %v1049 = vpop.xlane.xlu0 %1048
    %v1050 = vrcp.pop %v1049
    %v1051 = vmul.f32 %v1046, %v1050
    %1052 = vst.msk [vmem:[%s7] sm:$0xff] %vm1040, %v1051
    // Predicated region
    $region38: #{tpu_custom_call.1} parent=1 // pred_check
      _
    $region39: #{tpu_custom_call.1} parent=1 // pred_check_branch
      %1054 = sbr.rel (0) target = $region41
    $region40: #{tpu_custom_call.1} parent=1 // pred_region
      _
    $region41: #{tpu_custom_call.1} parent=1 // pred_fallthru
      _
    // Predicated region
    $region42: #{tpu_custom_call.1} parent=1 // pred_check
      _
    $region43: #{tpu_custom_call.1} parent=1 // pred_check_branch
      %1056 = sbr.rel (0) target = $region45
    $region44: #{tpu_custom_call.1} parent=1 // pred_region
      _
    $region45: #{tpu_custom_call.1} parent=1 // pred_fallthru
      _
    %1057 = vsyncpa [#allocation3], 1
    %1058 = vsyncpa [#allocation5], 1

</llo_original>
